<compile_context>
chip_gen: v7x
topology: tpu7x:2x2x1
jax: 0.10.0
libtpu: 0.0.40
codegen_flags: <defaults>
</compile_context>

<pallas_src>
import jax
import jax.numpy as jnp
from jax.experimental import pallas as pl
from jax.experimental.pallas import tpu as pltpu

HIDDEN = 768          # nn.Linear(768, 768)
MAX_SINGLE_TILE_B = 512   # below this, one grid step covers the whole batch


def _pooler_kernel(x_ref, w_ref, b_ref, out_ref):
    # x_ref  : [TM, HIDDEN]      f32 first-token activations (this batch tile)
    # w_ref  : [HIDDEN, HIDDEN]  bf16 full weight (resident across the grid)
    # b_ref  : [1, HIDDEN]       f32 bias
    # out_ref: [TM, HIDDEN]      f32 pooled output tile
    x = x_ref[...].astype(jnp.bfloat16)                      # native MXU dtype
    acc = jnp.dot(x, w_ref[...], preferred_element_type=jnp.float32)
    out_ref[...] = jnp.tanh(acc + b_ref[...]).astype(out_ref.dtype)  # f32 epilogue


@jax.jit
def bert_pooler(params, hidden_states):
    """hidden_states: [B, S, HIDDEN] f32 -> pooled_output: [B, HIDDEN] f32."""
    B, S, H = hidden_states.shape
    assert H == HIDDEN

    # First-token select: cheap XLA slice; kernel never streams the [B,S,H] tensor.
    first_token = hidden_states[:, 0, :]                     # [B, HIDDEN]

    w = params['w']
    if w.dtype != jnp.bfloat16:                              # no-op if already bf16
        w = w.astype(jnp.bfloat16)
    b = params['b'].astype(jnp.float32)

    # Batch tiling: single step at small B; at large B each step is a lane-dense
    # [TM, 768] tile and v7x shards steps across TensorCores.
    if B <= MAX_SINGLE_TILE_B:
        tm = B                                               # full-dim block, grid=(1,)
    else:
        tm = 256                                             # multiple of 8 sublanes
    grid = (pl.cdiv(B, tm),)

    cost = pl.CostEstimate(
        flops=2 * B * HIDDEN * HIDDEN,
        transcendentals=B * HIDDEN,
        bytes_accessed=HIDDEN * HIDDEN * 2 + B * HIDDEN * 4 * 2 + HIDDEN * 4,
    )

    return pl.pallas_call(
        _pooler_kernel,
        out_shape=jax.ShapeDtypeStruct((B, HIDDEN), jnp.float32),
        grid_spec=pltpu.PrefetchScalarGridSpec(
            num_scalar_prefetch=0,
            grid=grid,
            in_specs=[
                pl.BlockSpec((tm, HIDDEN), lambda i: (i, 0)),        # activations tile
                pl.BlockSpec((HIDDEN, HIDDEN), lambda i: (0, 0)),    # full weight, resident
                pl.BlockSpec((1, HIDDEN), lambda i: (0, 0)),         # bias, resident
            ],
            out_specs=pl.BlockSpec((tm, HIDDEN), lambda i: (i, 0)),
        ),
        compiler_params=pltpu.CompilerParams(
            dimension_semantics=("parallel",),               # batch axis -> 2 TCs on v7x
        ),
        cost_estimate=cost,
    )(first_token, w, b)


def init_params(key):
    # Weights stored in bf16 (cast once at init/load time); bias in f32.
    std = 0.02
    w = jax.random.normal(key, (HIDDEN, HIDDEN), dtype=jnp.float32) * std
    return {
        'w': w.astype(jnp.bfloat16),
        'b': jnp.zeros((1, HIDDEN), jnp.float32),
    }


if __name__ == "__main__":
    B, S = 2, 8
    key = jax.random.PRNGKey(0)
    k_x, k_p = jax.random.split(key, 2)

    hidden_states = jax.random.normal(k_x, (B, S, HIDDEN), dtype=jnp.float32)
    params = init_params(k_p)

    out = bert_pooler(params, hidden_states)
    jax.block_until_ready(out)
    assert out.shape == (B, HIDDEN)

    # Sanity check against a pure-JAX reference (tolerance reflects bf16 weights).
    first = hidden_states[:, 0, :]
    ref = jnp.tanh(first @ params['w'].astype(jnp.float32) + params['b'])
    assert jnp.max(jnp.abs(out - ref)) < 5e-2
    assert bool(jnp.all(jnp.isfinite(out)))

    print("KERNEL_OK")
</pallas_src>

<mosaic_0001>
module attributes {stable_mosaic.version = 11 : i64} {
  func.func @_pooler_kernel(%arg0: i32, %arg1: memref<2x768xf32, #tpu.memory_space<vmem>>, %arg2: memref<768x768xbf16, #tpu.memory_space<vmem>>, %arg3: memref<1x768xf32, #tpu.memory_space<vmem>>, %arg4: memref<2x768xf32, #tpu.memory_space<vmem>>) attributes {dimension_semantics = [#tpu.dimension_semantics<parallel>], iteration_bounds = array<i64: 1>, scalar_prefetch = 0 : i64, scratch_operands = 0 : i64, tpu.core_type = #tpu.core_type<tc>, window_params = [{transform_indices = @transform_0, window_bounds = array<i64: 2, 768>}, {pipeline_mode = #tpu.pipeline_mode<synchronous>, transform_indices = @transform_1, window_bounds = array<i64: 768, 768>}, {pipeline_mode = #tpu.pipeline_mode<synchronous>, transform_indices = @transform_2, window_bounds = array<i64: 1, 768>}, {transform_indices = @transform_3, window_bounds = array<i64: 2, 768>}]} {
    %c0 = arith.constant 0 : index
    %c0_0 = arith.constant 0 : index
    %0 = vector.load %arg1[%c0, %c0_0] : memref<2x768xf32, #tpu.memory_space<vmem>>, vector<2x768xf32>
    %1 = arith.truncf %0 : vector<2x768xf32> to vector<2x768xbf16>
    %c0_1 = arith.constant 0 : index
    %c0_2 = arith.constant 0 : index
    %2 = vector.load %arg2[%c0_1, %c0_2] : memref<768x768xbf16, #tpu.memory_space<vmem>>, vector<768x768xbf16>
    %cst = arith.constant dense<0.000000e+00> : vector<2x768xf32>
    %3 = tpu.matmul %1, %2, %cst {dimension_numbers = #tpu.dot_dimension_numbers<[1], [0], [0], [1], [0, 0, 1, 1], [], []>} : vector<2x768xbf16>, vector<768x768xbf16>, vector<2x768xf32> -> vector<2x768xf32>
    %c0_3 = arith.constant 0 : index
    %c0_4 = arith.constant 0 : index
    %4 = vector.load %arg3[%c0_3, %c0_4] : memref<1x768xf32, #tpu.memory_space<vmem>>, vector<1x768xf32>
    %5 = vector.broadcast %4 : vector<1x768xf32> to vector<2x768xf32>
    %6 = arith.addf %3, %5 : vector<2x768xf32>
    %7 = math.tanh %6 : vector<2x768xf32>
    %c0_5 = arith.constant 0 : index
    %c0_6 = arith.constant 0 : index
    %8 = vector.load %arg4[%c0_5, %c0_6] : memref<2x768xf32, #tpu.memory_space<vmem>>, vector<2x768xf32>
    tpu.vector_store %arg4[%c0_5, %c0_6], %7 {strides = array<i32>} : memref<2x768xf32, #tpu.memory_space<vmem>>, vector<2x768xf32>,
    return
  }
  func.func @transform_0(%arg0: i32) -> (i32, i32) {
    %c0_i32 = arith.constant 0 : i32
    %c0_i32_0 = arith.constant 0 : i32
    return %arg0, %c0_i32 : i32, i32
  }
  func.func @transform_1(%arg0: i32) -> (i32, i32) {
    %c0_i32 = arith.constant 0 : i32
    %c0_i32_0 = arith.constant 0 : i32
    %c0_i32_1 = arith.constant 0 : i32
    return %c0_i32, %c0_i32_0 : i32, i32
  }
  func.func @transform_2(%arg0: i32) -> (i32, i32) {
    %c0_i32 = arith.constant 0 : i32
    %c0_i32_0 = arith.constant 0 : i32
    %c0_i32_1 = arith.constant 0 : i32
    return %c0_i32, %c0_i32_0 : i32, i32
  }
  func.func @transform_3(%arg0: i32) -> (i32, i32) {
    %c0_i32 = arith.constant 0 : i32
    %c0_i32_0 = arith.constant 0 : i32
    return %arg0, %c0_i32 : i32, i32
  }
}

</mosaic_0001>

<llo_original>
// kernel: bert_pooler.1
$region0: #{bert_pooler.1}
  #allocation0 [shape = 'u32[]', space=smem, size = 0x4, offset = 0x4, fixed_abs, tag = 'smem constant byte address 0x4 - core index']
  #allocation1 [shape = 'u32[144,128]{1,0:T(1,128)}', space=vmem, size = 0x12000, scoped, tag = 'internal scratch']
  %s0 = inlined_call_operand.vmem [shape: f32[2,768], index: 0, kind: input, shape index: {}]
  %s1 = inlined_call_operand.hbm [shape: bf16[768,768], index: 1, kind: input, shape index: {}]
  %s2 = inlined_call_operand.hbm [shape: f32[1,768], index: 2, kind: input, shape index: {}]
  %s3 = inlined_call_operand.hbm [shape: f32[2,768], index: 3, kind: output, shape index: {}]
  %s4 = sld [smem:[#allocation0]]
  $region30: #{bert_pooler.1} parent=0
    _
  %s6 = ssub.s32 1, %s4
  %s7 = scalar_select 0, %s6, %s4
  $region1: #{bert_pooler.1} parent=0
    #allocation2 [shape = 'u8[1179648]{0}', space=vmem, size = 0x120000, scoped, tag = 'input window, operand 1, single buffered']
    #allocation3 [shape = 's32[1]{0}', space=sflag, size = 0x4, scoped, tag = 'scoped memory for bert_pooler.1']
    #allocation4 [shape = 's32[1]{0}', space=sflag, size = 0x4, scoped, tag = 'scoped memory for bert_pooler.1']
    #allocation5 [shape = 'u8[3072]{0}', space=vmem, size = 0xc00, scoped, tag = 'input window, operand 2, single buffered']
    #allocation6 [shape = 's32[1]{0}', space=sflag, size = 0x4, scoped, tag = 'scoped memory for bert_pooler.1']
    #allocation7 [shape = 'u8[6144]{0}', space=vmem, size = 0x1800, scoped, tag = 'output window, operand 0, single buffered']
    %8 = vsyncpa [#allocation3], 0
    %9 = vsyncpa [#allocation6], 0
    %10 = vsyncpa [#allocation4], 0
    // Predicated region
    $region2: #{bert_pooler.1} parent=1 // pred_check
      _
    $region3: #{bert_pooler.1} parent=1 // pred_check_branch
      %12 = sbr.rel (0) target = $region5
    $region4: #{bert_pooler.1} parent=1 // pred_region
      _
    $region5: #{bert_pooler.1} parent=1 // pred_fallthru
      _
    // Predicated region
    $region6: #{bert_pooler.1} parent=1 // pred_check
      _
    $region7: #{bert_pooler.1} parent=1 // pred_check_branch
      %14 = sbr.rel (0) target = $region9
    $region8: #{bert_pooler.1} parent=1 // pred_region
      %s16 = ssub.s32 36864, 36864
      %17 = vsyncadd [#allocation3], %s16
      %s18 = sshll.u32 [#allocation2], 4
      %s19 = int_to_ptr.vmem [resolvable:$true] %s18
      %24 = dma.hbm_to_vmem [thread:$0]  %s1, 36864, %s19, [#allocation3], 384, 384, 24
    $region9: #{bert_pooler.1} parent=1 // pred_fallthru
      _
    // Predicated region
    $region10: #{bert_pooler.1} parent=1 // pred_check
      _
    $region11: #{bert_pooler.1} parent=1 // pred_check_branch
      %26 = sbr.rel (0) target = $region13
    $region12: #{bert_pooler.1} parent=1 // pred_region
      %s28 = ssub.s32 96, 96
      %29 = vsyncadd [#allocation6], %s28
      %s31 = sshll.u32 [#allocation5], 4
      %s32 = int_to_ptr.vmem [resolvable:$true] %s31
      %34 = dma.hbm_to_vmem [thread:$0]  %s2, 96, %s32, [#allocation6]
    $region13: #{bert_pooler.1} parent=1 // pred_fallthru
      _
    // Predicated region
    $region14: #{bert_pooler.1} parent=1 // pred_check
      _
    $region15: #{bert_pooler.1} parent=1 // pred_check_branch
      %36 = sbr.rel (0) target = $region17
    $region16: #{bert_pooler.1} parent=1 // pred_region
      %37 = dma.done [#allocation3], 36864
    $region17: #{bert_pooler.1} parent=1 // pred_fallthru
      _
    // Predicated region
    $region18: #{bert_pooler.1} parent=1 // pred_check
      _
    $region19: #{bert_pooler.1} parent=1 // pred_check_branch
      %39 = sbr.rel (0) target = $region21
    $region20: #{bert_pooler.1} parent=1 // pred_region
      %40 = dma.done [#allocation6], 96
    $region21: #{bert_pooler.1} parent=1 // pred_fallthru
      _
    %v41 = vld [vmem:[%s0] sm:$0xff]
    %v42 = vld [vmem:[%s0 + $0x8] sm:$0xf]
    %v45 = vcombine.high %v41, %v41
    %v47 = vunpack.c.l.s4 1983009808
    %v48 = vunpack.c.0.s8 %v47
    %v49 = vlaneseq
    %v50 = vshrl.u32 %v49, 7
    %v51 = vsub.s32 %v48, %v50
    %v52 = vrot.slane %v41, %v51
    %v54 = vunpack.c.l.s4 1983009808
    %v55 = vunpack.c.0.s8 %v54
    %v56 = vlaneseq
    %v57 = vshrl.u32 %v56, 7
    %v58 = vsub.s32 %v55, %v57
    %v59 = vrot.slane %v45, %v58
    %v60 = vcombine.high %v52, %v52
    %v61 = vcombine.high %v59, %v59
    %v63 = vunpack.c.l.s4 1983009808
    %v64 = vunpack.c.0.s8 %v63
    %v65 = vlaneseq
    %v66 = vshrl.u32 %v65, 7
    %v67 = vsub.s32 %v64, %v66
    %v68 = vrot.slane %v42, %v67
    %v69 = vcombine.high %v68, %v68
    %v76 = vpack.c.bf16 %v52, %v52
    %v77 = vpack.c.bf16 %v60, %v60
    %v78 = vpack.c.bf16 %v59, %v59
    %v79 = vpack.c.bf16 %v61, %v61
    %v80 = vpack.c.bf16 %v68, %v68
    %v81 = vpack.c.bf16 %v69, %v69
    %v82 = vld [vmem:[#allocation2] sm:$0xff]
    %v83 = vld [vmem:[#allocation2 + $0x8] sm:$0xff]
    %v84 = vld [vmem:[#allocation2 + $0x10] sm:$0xff]
    %v85 = vld [vmem:[#allocation2 + $0x18] sm:$0xff]
    %v86 = vld [vmem:[#allocation2 + $0x20] sm:$0xff]
    %v87 = vld [vmem:[#allocation2 + $0x28] sm:$0xff]
    %v88 = vld [vmem:[#allocation2 + $0x30] sm:$0xff]
    %v89 = vld [vmem:[#allocation2 + $0x38] sm:$0xff]
    %v90 = vld [vmem:[#allocation2 + $0x40] sm:$0xff]
    %v91 = vld [vmem:[#allocation2 + $0x48] sm:$0xff]
    %v92 = vld [vmem:[#allocation2 + $0x50] sm:$0xff]
    %v93 = vld [vmem:[#allocation2 + $0x58] sm:$0xff]
    %v94 = vld [vmem:[#allocation2 + $0x60] sm:$0xff]
    %v95 = vld [vmem:[#allocation2 + $0x68] sm:$0xff]
    %v96 = vld [vmem:[#allocation2 + $0x70] sm:$0xff]
    %v97 = vld [vmem:[#allocation2 + $0x78] sm:$0xff]
    %v98 = vld [vmem:[#allocation2 + $0x80] sm:$0xff]
    %v99 = vld [vmem:[#allocation2 + $0x88] sm:$0xff]
    %v100 = vld [vmem:[#allocation2 + $0x90] sm:$0xff]
    %v101 = vld [vmem:[#allocation2 + $0x98] sm:$0xff]
    %v102 = vld [vmem:[#allocation2 + $0xa0] sm:$0xff]
    %v103 = vld [vmem:[#allocation2 + $0xa8] sm:$0xff]
    %v104 = vld [vmem:[#allocation2 + $0xb0] sm:$0xff]
    %v105 = vld [vmem:[#allocation2 + $0xb8] sm:$0xff]
    %v106 = vld [vmem:[#allocation2 + $0xc0] sm:$0xff]
    %v107 = vld [vmem:[#allocation2 + $0xc8] sm:$0xff]
    %v108 = vld [vmem:[#allocation2 + $0xd0] sm:$0xff]
    %v109 = vld [vmem:[#allocation2 + $0xd8] sm:$0xff]
    %v110 = vld [vmem:[#allocation2 + $0xe0] sm:$0xff]
    %v111 = vld [vmem:[#allocation2 + $0xe8] sm:$0xff]
    %v112 = vld [vmem:[#allocation2 + $0xf0] sm:$0xff]
    %v113 = vld [vmem:[#allocation2 + $0xf8] sm:$0xff]
    %v114 = vld [vmem:[#allocation2 + $0x100] sm:$0xff]
    %v115 = vld [vmem:[#allocation2 + $0x108] sm:$0xff]
    %v116 = vld [vmem:[#allocation2 + $0x110] sm:$0xff]
    %v117 = vld [vmem:[#allocation2 + $0x118] sm:$0xff]
    %v118 = vld [vmem:[#allocation2 + $0x120] sm:$0xff]
    %v119 = vld [vmem:[#allocation2 + $0x128] sm:$0xff]
    %v120 = vld [vmem:[#allocation2 + $0x130] sm:$0xff]
    %v121 = vld [vmem:[#allocation2 + $0x138] sm:$0xff]
    %v122 = vld [vmem:[#allocation2 + $0x140] sm:$0xff]
    %v123 = vld [vmem:[#allocation2 + $0x148] sm:$0xff]
    %v124 = vld [vmem:[#allocation2 + $0x150] sm:$0xff]
    %v125 = vld [vmem:[#allocation2 + $0x158] sm:$0xff]
    %v126 = vld [vmem:[#allocation2 + $0x160] sm:$0xff]
    %v127 = vld [vmem:[#allocation2 + $0x168] sm:$0xff]
    %v128 = vld [vmem:[#allocation2 + $0x170] sm:$0xff]
    %v129 = vld [vmem:[#allocation2 + $0x178] sm:$0xff]
    %v130 = vld [vmem:[#allocation2 + $0x180] sm:$0xff]
    %v131 = vld [vmem:[#allocation2 + $0x188] sm:$0xff]
    %v132 = vld [vmem:[#allocation2 + $0x190] sm:$0xff]
    %v133 = vld [vmem:[#allocation2 + $0x198] sm:$0xff]
    %v134 = vld [vmem:[#allocation2 + $0x1a0] sm:$0xff]
    %v135 = vld [vmem:[#allocation2 + $0x1a8] sm:$0xff]
    %v136 = vld [vmem:[#allocation2 + $0x1b0] sm:$0xff]
    %v137 = vld [vmem:[#allocation2 + $0x1b8] sm:$0xff]
    %v138 = vld [vmem:[#allocation2 + $0x1c0] sm:$0xff]
    %v139 = vld [vmem:[#allocation2 + $0x1c8] sm:$0xff]
    %v140 = vld [vmem:[#allocation2 + $0x1d0] sm:$0xff]
    %v141 = vld [vmem:[#allocation2 + $0x1d8] sm:$0xff]
    %v142 = vld [vmem:[#allocation2 + $0x1e0] sm:$0xff]
    %v143 = vld [vmem:[#allocation2 + $0x1e8] sm:$0xff]
    %v144 = vld [vmem:[#allocation2 + $0x1f0] sm:$0xff]
    %v145 = vld [vmem:[#allocation2 + $0x1f8] sm:$0xff]
    %v146 = vld [vmem:[#allocation2 + $0x200] sm:$0xff]
    %v147 = vld [vmem:[#allocation2 + $0x208] sm:$0xff]
    %v148 = vld [vmem:[#allocation2 + $0x210] sm:$0xff]
    %v149 = vld [vmem:[#allocation2 + $0x218] sm:$0xff]
    %v150 = vld [vmem:[#allocation2 + $0x220] sm:$0xff]
    %v151 = vld [vmem:[#allocation2 + $0x228] sm:$0xff]
    %v152 = vld [vmem:[#allocation2 + $0x230] sm:$0xff]
    %v153 = vld [vmem:[#allocation2 + $0x238] sm:$0xff]
    %v154 = vld [vmem:[#allocation2 + $0x240] sm:$0xff]
    %v155 = vld [vmem:[#allocation2 + $0x248] sm:$0xff]
    %v156 = vld [vmem:[#allocation2 + $0x250] sm:$0xff]
    %v157 = vld [vmem:[#allocation2 + $0x258] sm:$0xff]
    %v158 = vld [vmem:[#allocation2 + $0x260] sm:$0xff]
    %v159 = vld [vmem:[#allocation2 + $0x268] sm:$0xff]
    %v160 = vld [vmem:[#allocation2 + $0x270] sm:$0xff]
    %v161 = vld [vmem:[#allocation2 + $0x278] sm:$0xff]
    %v162 = vld [vmem:[#allocation2 + $0x280] sm:$0xff]
    %v163 = vld [vmem:[#allocation2 + $0x288] sm:$0xff]
    %v164 = vld [vmem:[#allocation2 + $0x290] sm:$0xff]
    %v165 = vld [vmem:[#allocation2 + $0x298] sm:$0xff]
    %v166 = vld [vmem:[#allocation2 + $0x2a0] sm:$0xff]
    %v167 = vld [vmem:[#allocation2 + $0x2a8] sm:$0xff]
    %v168 = vld [vmem:[#allocation2 + $0x2b0] sm:$0xff]
    %v169 = vld [vmem:[#allocation2 + $0x2b8] sm:$0xff]
    %v170 = vld [vmem:[#allocation2 + $0x2c0] sm:$0xff]
    %v171 = vld [vmem:[#allocation2 + $0x2c8] sm:$0xff]
    %v172 = vld [vmem:[#allocation2 + $0x2d0] sm:$0xff]
    %v173 = vld [vmem:[#allocation2 + $0x2d8] sm:$0xff]
    %v174 = vld [vmem:[#allocation2 + $0x2e0] sm:$0xff]
    %v175 = vld [vmem:[#allocation2 + $0x2e8] sm:$0xff]
    %v176 = vld [vmem:[#allocation2 + $0x2f0] sm:$0xff]
    %v177 = vld [vmem:[#allocation2 + $0x2f8] sm:$0xff]
    %v178 = vld [vmem:[#allocation2 + $0x300] sm:$0xff]
    %v179 = vld [vmem:[#allocation2 + $0x308] sm:$0xff]
    %v180 = vld [vmem:[#allocation2 + $0x310] sm:$0xff]
    %v181 = vld [vmem:[#allocation2 + $0x318] sm:$0xff]
    %v182 = vld [vmem:[#allocation2 + $0x320] sm:$0xff]
    %v183 = vld [vmem:[#allocation2 + $0x328] sm:$0xff]
    %v184 = vld [vmem:[#allocation2 + $0x330] sm:$0xff]
    %v185 = vld [vmem:[#allocation2 + $0x338] sm:$0xff]
    %v186 = vld [vmem:[#allocation2 + $0x340] sm:$0xff]
    %v187 = vld [vmem:[#allocation2 + $0x348] sm:$0xff]
    %v188 = vld [vmem:[#allocation2 + $0x350] sm:$0xff]
    %v189 = vld [vmem:[#allocation2 + $0x358] sm:$0xff]
    %v190 = vld [vmem:[#allocation2 + $0x360] sm:$0xff]
    %v191 = vld [vmem:[#allocation2 + $0x368] sm:$0xff]
    %v192 = vld [vmem:[#allocation2 + $0x370] sm:$0xff]
    %v193 = vld [vmem:[#allocation2 + $0x378] sm:$0xff]
    %v194 = vld [vmem:[#allocation2 + $0x380] sm:$0xff]
    %v195 = vld [vmem:[#allocation2 + $0x388] sm:$0xff]
    %v196 = vld [vmem:[#allocation2 + $0x390] sm:$0xff]
    %v197 = vld [vmem:[#allocation2 + $0x398] sm:$0xff]
    %v198 = vld [vmem:[#allocation2 + $0x3a0] sm:$0xff]
    %v199 = vld [vmem:[#allocation2 + $0x3a8] sm:$0xff]
    %v200 = vld [vmem:[#allocation2 + $0x3b0] sm:$0xff]
    %v201 = vld [vmem:[#allocation2 + $0x3b8] sm:$0xff]
    %v202 = vld [vmem:[#allocation2 + $0x3c0] sm:$0xff]
    %v203 = vld [vmem:[#allocation2 + $0x3c8] sm:$0xff]
    %v204 = vld [vmem:[#allocation2 + $0x3d0] sm:$0xff]
    %v205 = vld [vmem:[#allocation2 + $0x3d8] sm:$0xff]
    %v206 = vld [vmem:[#allocation2 + $0x3e0] sm:$0xff]
    %v207 = vld [vmem:[#allocation2 + $0x3e8] sm:$0xff]
    %v208 = vld [vmem:[#allocation2 + $0x3f0] sm:$0xff]
    %v209 = vld [vmem:[#allocation2 + $0x3f8] sm:$0xff]
    %v210 = vld [vmem:[#allocation2 + $0x400] sm:$0xff]
    %v211 = vld [vmem:[#allocation2 + $0x408] sm:$0xff]
    %v212 = vld [vmem:[#allocation2 + $0x410] sm:$0xff]
    %v213 = vld [vmem:[#allocation2 + $0x418] sm:$0xff]
    %v214 = vld [vmem:[#allocation2 + $0x420] sm:$0xff]
    %v215 = vld [vmem:[#allocation2 + $0x428] sm:$0xff]
    %v216 = vld [vmem:[#allocation2 + $0x430] sm:$0xff]
    %v217 = vld [vmem:[#allocation2 + $0x438] sm:$0xff]
    %v218 = vld [vmem:[#allocation2 + $0x440] sm:$0xff]
    %v219 = vld [vmem:[#allocation2 + $0x448] sm:$0xff]
    %v220 = vld [vmem:[#allocation2 + $0x450] sm:$0xff]
    %v221 = vld [vmem:[#allocation2 + $0x458] sm:$0xff]
    %v222 = vld [vmem:[#allocation2 + $0x460] sm:$0xff]
    %v223 = vld [vmem:[#allocation2 + $0x468] sm:$0xff]
    %v224 = vld [vmem:[#allocation2 + $0x470] sm:$0xff]
    %v225 = vld [vmem:[#allocation2 + $0x478] sm:$0xff]
    %v226 = vld [vmem:[#allocation2 + $0x480] sm:$0xff]
    %v227 = vld [vmem:[#allocation2 + $0x488] sm:$0xff]
    %v228 = vld [vmem:[#allocation2 + $0x490] sm:$0xff]
    %v229 = vld [vmem:[#allocation2 + $0x498] sm:$0xff]
    %v230 = vld [vmem:[#allocation2 + $0x4a0] sm:$0xff]
    %v231 = vld [vmem:[#allocation2 + $0x4a8] sm:$0xff]
    %v232 = vld [vmem:[#allocation2 + $0x4b0] sm:$0xff]
    %v233 = vld [vmem:[#allocation2 + $0x4b8] sm:$0xff]
    %v234 = vld [vmem:[#allocation2 + $0x4c0] sm:$0xff]
    %v235 = vld [vmem:[#allocation2 + $0x4c8] sm:$0xff]
    %v236 = vld [vmem:[#allocation2 + $0x4d0] sm:$0xff]
    %v237 = vld [vmem:[#allocation2 + $0x4d8] sm:$0xff]
    %v238 = vld [vmem:[#allocation2 + $0x4e0] sm:$0xff]
    %v239 = vld [vmem:[#allocation2 + $0x4e8] sm:$0xff]
    %v240 = vld [vmem:[#allocation2 + $0x4f0] sm:$0xff]
    %v241 = vld [vmem:[#allocation2 + $0x4f8] sm:$0xff]
    %v242 = vld [vmem:[#allocation2 + $0x500] sm:$0xff]
    %v243 = vld [vmem:[#allocation2 + $0x508] sm:$0xff]
    %v244 = vld [vmem:[#allocation2 + $0x510] sm:$0xff]
    %v245 = vld [vmem:[#allocation2 + $0x518] sm:$0xff]
    %v246 = vld [vmem:[#allocation2 + $0x520] sm:$0xff]
    %v247 = vld [vmem:[#allocation2 + $0x528] sm:$0xff]
    %v248 = vld [vmem:[#allocation2 + $0x530] sm:$0xff]
    %v249 = vld [vmem:[#allocation2 + $0x538] sm:$0xff]
    %v250 = vld [vmem:[#allocation2 + $0x540] sm:$0xff]
    %v251 = vld [vmem:[#allocation2 + $0x548] sm:$0xff]
    %v252 = vld [vmem:[#allocation2 + $0x550] sm:$0xff]
    %v253 = vld [vmem:[#allocation2 + $0x558] sm:$0xff]
    %v254 = vld [vmem:[#allocation2 + $0x560] sm:$0xff]
    %v255 = vld [vmem:[#allocation2 + $0x568] sm:$0xff]
    %v256 = vld [vmem:[#allocation2 + $0x570] sm:$0xff]
    %v257 = vld [vmem:[#allocation2 + $0x578] sm:$0xff]
    %v258 = vld [vmem:[#allocation2 + $0x580] sm:$0xff]
    %v259 = vld [vmem:[#allocation2 + $0x588] sm:$0xff]
    %v260 = vld [vmem:[#allocation2 + $0x590] sm:$0xff]
    %v261 = vld [vmem:[#allocation2 + $0x598] sm:$0xff]
    %v262 = vld [vmem:[#allocation2 + $0x5a0] sm:$0xff]
    %v263 = vld [vmem:[#allocation2 + $0x5a8] sm:$0xff]
    %v264 = vld [vmem:[#allocation2 + $0x5b0] sm:$0xff]
    %v265 = vld [vmem:[#allocation2 + $0x5b8] sm:$0xff]
    %v266 = vld [vmem:[#allocation2 + $0x5c0] sm:$0xff]
    %v267 = vld [vmem:[#allocation2 + $0x5c8] sm:$0xff]
    %v268 = vld [vmem:[#allocation2 + $0x5d0] sm:$0xff]
    %v269 = vld [vmem:[#allocation2 + $0x5d8] sm:$0xff]
    %v270 = vld [vmem:[#allocation2 + $0x5e0] sm:$0xff]
    %v271 = vld [vmem:[#allocation2 + $0x5e8] sm:$0xff]
    %v272 = vld [vmem:[#allocation2 + $0x5f0] sm:$0xff]
    %v273 = vld [vmem:[#allocation2 + $0x5f8] sm:$0xff]
    %v274 = vld [vmem:[#allocation2 + $0x600] sm:$0xff]
    %v275 = vld [vmem:[#allocation2 + $0x608] sm:$0xff]
    %v276 = vld [vmem:[#allocation2 + $0x610] sm:$0xff]
    %v277 = vld [vmem:[#allocation2 + $0x618] sm:$0xff]
    %v278 = vld [vmem:[#allocation2 + $0x620] sm:$0xff]
    %v279 = vld [vmem:[#allocation2 + $0x628] sm:$0xff]
    %v280 = vld [vmem:[#allocation2 + $0x630] sm:$0xff]
    %v281 = vld [vmem:[#allocation2 + $0x638] sm:$0xff]
    %v282 = vld [vmem:[#allocation2 + $0x640] sm:$0xff]
    %v283 = vld [vmem:[#allocation2 + $0x648] sm:$0xff]
    %v284 = vld [vmem:[#allocation2 + $0x650] sm:$0xff]
    %v285 = vld [vmem:[#allocation2 + $0x658] sm:$0xff]
    %v286 = vld [vmem:[#allocation2 + $0x660] sm:$0xff]
    %v287 = vld [vmem:[#allocation2 + $0x668] sm:$0xff]
    %v288 = vld [vmem:[#allocation2 + $0x670] sm:$0xff]
    %v289 = vld [vmem:[#allocation2 + $0x678] sm:$0xff]
    %v290 = vld [vmem:[#allocation2 + $0x680] sm:$0xff]
    %v291 = vld [vmem:[#allocation2 + $0x688] sm:$0xff]
    %v292 = vld [vmem:[#allocation2 + $0x690] sm:$0xff]
    %v293 = vld [vmem:[#allocation2 + $0x698] sm:$0xff]
    %v294 = vld [vmem:[#allocation2 + $0x6a0] sm:$0xff]
    %v295 = vld [vmem:[#allocation2 + $0x6a8] sm:$0xff]
    %v296 = vld [vmem:[#allocation2 + $0x6b0] sm:$0xff]
    %v297 = vld [vmem:[#allocation2 + $0x6b8] sm:$0xff]
    %v298 = vld [vmem:[#allocation2 + $0x6c0] sm:$0xff]
    %v299 = vld [vmem:[#allocation2 + $0x6c8] sm:$0xff]
    %v300 = vld [vmem:[#allocation2 + $0x6d0] sm:$0xff]
    %v301 = vld [vmem:[#allocation2 + $0x6d8] sm:$0xff]
    %v302 = vld [vmem:[#allocation2 + $0x6e0] sm:$0xff]
    %v303 = vld [vmem:[#allocation2 + $0x6e8] sm:$0xff]
    %v304 = vld [vmem:[#allocation2 + $0x6f0] sm:$0xff]
    %v305 = vld [vmem:[#allocation2 + $0x6f8] sm:$0xff]
    %v306 = vld [vmem:[#allocation2 + $0x700] sm:$0xff]
    %v307 = vld [vmem:[#allocation2 + $0x708] sm:$0xff]
    %v308 = vld [vmem:[#allocation2 + $0x710] sm:$0xff]
    %v309 = vld [vmem:[#allocation2 + $0x718] sm:$0xff]
    %v310 = vld [vmem:[#allocation2 + $0x720] sm:$0xff]
    %v311 = vld [vmem:[#allocation2 + $0x728] sm:$0xff]
    %v312 = vld [vmem:[#allocation2 + $0x730] sm:$0xff]
    %v313 = vld [vmem:[#allocation2 + $0x738] sm:$0xff]
    %v314 = vld [vmem:[#allocation2 + $0x740] sm:$0xff]
    %v315 = vld [vmem:[#allocation2 + $0x748] sm:$0xff]
    %v316 = vld [vmem:[#allocation2 + $0x750] sm:$0xff]
    %v317 = vld [vmem:[#allocation2 + $0x758] sm:$0xff]
    %v318 = vld [vmem:[#allocation2 + $0x760] sm:$0xff]
    %v319 = vld [vmem:[#allocation2 + $0x768] sm:$0xff]
    %v320 = vld [vmem:[#allocation2 + $0x770] sm:$0xff]
    %v321 = vld [vmem:[#allocation2 + $0x778] sm:$0xff]
    %v322 = vld [vmem:[#allocation2 + $0x780] sm:$0xff]
    %v323 = vld [vmem:[#allocation2 + $0x788] sm:$0xff]
    %v324 = vld [vmem:[#allocation2 + $0x790] sm:$0xff]
    %v325 = vld [vmem:[#allocation2 + $0x798] sm:$0xff]
    %v326 = vld [vmem:[#allocation2 + $0x7a0] sm:$0xff]
    %v327 = vld [vmem:[#allocation2 + $0x7a8] sm:$0xff]
    %v328 = vld [vmem:[#allocation2 + $0x7b0] sm:$0xff]
    %v329 = vld [vmem:[#allocation2 + $0x7b8] sm:$0xff]
    %v330 = vld [vmem:[#allocation2 + $0x7c0] sm:$0xff]
    %v331 = vld [vmem:[#allocation2 + $0x7c8] sm:$0xff]
    %v332 = vld [vmem:[#allocation2 + $0x7d0] sm:$0xff]
    %v333 = vld [vmem:[#allocation2 + $0x7d8] sm:$0xff]
    %v334 = vld [vmem:[#allocation2 + $0x7e0] sm:$0xff]
    %v335 = vld [vmem:[#allocation2 + $0x7e8] sm:$0xff]
    %v336 = vld [vmem:[#allocation2 + $0x7f0] sm:$0xff]
    %v337 = vld [vmem:[#allocation2 + $0x7f8] sm:$0xff]
    %v338 = vld [vmem:[#allocation2 + $0x800] sm:$0xff]
    %v339 = vld [vmem:[#allocation2 + $0x808] sm:$0xff]
    %v340 = vld [vmem:[#allocation2 + $0x810] sm:$0xff]
    %v341 = vld [vmem:[#allocation2 + $0x818] sm:$0xff]
    %v342 = vld [vmem:[#allocation2 + $0x820] sm:$0xff]
    %v343 = vld [vmem:[#allocation2 + $0x828] sm:$0xff]
    %v344 = vld [vmem:[#allocation2 + $0x830] sm:$0xff]
    %v345 = vld [vmem:[#allocation2 + $0x838] sm:$0xff]
    %v346 = vld [vmem:[#allocation2 + $0x840] sm:$0xff]
    %v347 = vld [vmem:[#allocation2 + $0x848] sm:$0xff]
    %v348 = vld [vmem:[#allocation2 + $0x850] sm:$0xff]
    %v349 = vld [vmem:[#allocation2 + $0x858] sm:$0xff]
    %v350 = vld [vmem:[#allocation2 + $0x860] sm:$0xff]
    %v351 = vld [vmem:[#allocation2 + $0x868] sm:$0xff]
    %v352 = vld [vmem:[#allocation2 + $0x870] sm:$0xff]
    %v353 = vld [vmem:[#allocation2 + $0x878] sm:$0xff]
    %v354 = vld [vmem:[#allocation2 + $0x880] sm:$0xff]
    %v355 = vld [vmem:[#allocation2 + $0x888] sm:$0xff]
    %v356 = vld [vmem:[#allocation2 + $0x890] sm:$0xff]
    %v357 = vld [vmem:[#allocation2 + $0x898] sm:$0xff]
    %v358 = vld [vmem:[#allocation2 + $0x8a0] sm:$0xff]
    %v359 = vld [vmem:[#allocation2 + $0x8a8] sm:$0xff]
    %v360 = vld [vmem:[#allocation2 + $0x8b0] sm:$0xff]
    %v361 = vld [vmem:[#allocation2 + $0x8b8] sm:$0xff]
    %v362 = vld [vmem:[#allocation2 + $0x8c0] sm:$0xff]
    %v363 = vld [vmem:[#allocation2 + $0x8c8] sm:$0xff]
    %v364 = vld [vmem:[#allocation2 + $0x8d0] sm:$0xff]
    %v365 = vld [vmem:[#allocation2 + $0x8d8] sm:$0xff]
    %v366 = vld [vmem:[#allocation2 + $0x8e0] sm:$0xff]
    %v367 = vld [vmem:[#allocation2 + $0x8e8] sm:$0xff]
    %v368 = vld [vmem:[#allocation2 + $0x8f0] sm:$0xff]
    %v369 = vld [vmem:[#allocation2 + $0x8f8] sm:$0xff]
    %v370 = vld [vmem:[#allocation5] sm:$0x3f]
    %v372 = vlaneseq
    %v373 = vshrl.u32 %v372, 7
    %v374 = vsub.s32 0, %v373
    %v375 = vrot.slane %v370, %v374
    %v376 = vlaneseq
    %v377 = vshrl.u32 %v376, 7
    %v378 = vsub.s32 1, %v377
    %v379 = vrot.slane %v370, %v378
    %v380 = vlaneseq
    %v381 = vshrl.u32 %v380, 7
    %v382 = vsub.s32 2, %v381
    %v383 = vrot.slane %v370, %v382
    %v384 = vlaneseq
    %v385 = vshrl.u32 %v384, 7
    %v386 = vsub.s32 3, %v385
    %v387 = vrot.slane %v370, %v386
    %v388 = vlaneseq
    %v389 = vshrl.u32 %v388, 7
    %v390 = vsub.s32 4, %v389
    %v391 = vrot.slane %v370, %v390
    %v392 = vlaneseq
    %v393 = vshrl.u32 %v392, 7
    %v394 = vsub.s32 5, %v393
    %v395 = vrot.slane %v370, %v394
    %v690 = vunpack.c.l.b16 %v82
    %v691 = vunpack.c.h.b16 %v82
    %v692 = vunpack.c.l.b16 %v83
    %v693 = vunpack.c.h.b16 %v83
    %v694 = vunpack.c.l.b16 %v84
    %v695 = vunpack.c.h.b16 %v84
    %v696 = vunpack.c.l.b16 %v85
    %v697 = vunpack.c.h.b16 %v85
    %v698 = vunpack.c.l.b16 %v86
    %v699 = vunpack.c.h.b16 %v86
    %v700 = vunpack.c.l.b16 %v87
    %v701 = vunpack.c.h.b16 %v87
    %v702 = vunpack.c.l.b16 %v88
    %v703 = vunpack.c.h.b16 %v88
    %v704 = vunpack.c.l.b16 %v89
    %v705 = vunpack.c.h.b16 %v89
    %v706 = vunpack.c.l.b16 %v90
    %v707 = vunpack.c.h.b16 %v90
    %v708 = vunpack.c.l.b16 %v91
    %v709 = vunpack.c.h.b16 %v91
    %v710 = vunpack.c.l.b16 %v92
    %v711 = vunpack.c.h.b16 %v92
    %v712 = vunpack.c.l.b16 %v93
    %v713 = vunpack.c.h.b16 %v93
    %v714 = vunpack.c.l.b16 %v94
    %v715 = vunpack.c.h.b16 %v94
    %v716 = vunpack.c.l.b16 %v95
    %v717 = vunpack.c.h.b16 %v95
    %v718 = vunpack.c.l.b16 %v96
    %v719 = vunpack.c.h.b16 %v96
    %v720 = vunpack.c.l.b16 %v97
    %v721 = vunpack.c.h.b16 %v97
    %v722 = vunpack.c.l.b16 %v98
    %v723 = vunpack.c.h.b16 %v98
    %v724 = vunpack.c.l.b16 %v99
    %v725 = vunpack.c.h.b16 %v99
    %v726 = vunpack.c.l.b16 %v100
    %v727 = vunpack.c.h.b16 %v100
    %v728 = vunpack.c.l.b16 %v101
    %v729 = vunpack.c.h.b16 %v101
    %v730 = vunpack.c.l.b16 %v102
    %v731 = vunpack.c.h.b16 %v102
    %v732 = vunpack.c.l.b16 %v103
    %v733 = vunpack.c.h.b16 %v103
    %v734 = vunpack.c.l.b16 %v104
    %v735 = vunpack.c.h.b16 %v104
    %v736 = vunpack.c.l.b16 %v105
    %v737 = vunpack.c.h.b16 %v105
    %v738 = vunpack.c.l.b16 %v106
    %v739 = vunpack.c.h.b16 %v106
    %v740 = vunpack.c.l.b16 %v107
    %v741 = vunpack.c.h.b16 %v107
    %v742 = vunpack.c.l.b16 %v108
    %v743 = vunpack.c.h.b16 %v108
    %v744 = vunpack.c.l.b16 %v109
    %v745 = vunpack.c.h.b16 %v109
    %v746 = vunpack.c.l.b16 %v110
    %v747 = vunpack.c.h.b16 %v110
    %v748 = vunpack.c.l.b16 %v111
    %v749 = vunpack.c.h.b16 %v111
    %v750 = vunpack.c.l.b16 %v112
    %v751 = vunpack.c.h.b16 %v112
    %v752 = vunpack.c.l.b16 %v113
    %v753 = vunpack.c.h.b16 %v113
    %v754 = vunpack.c.l.b16 %v114
    %v755 = vunpack.c.h.b16 %v114
    %v756 = vunpack.c.l.b16 %v115
    %v757 = vunpack.c.h.b16 %v115
    %v758 = vunpack.c.l.b16 %v116
    %v759 = vunpack.c.h.b16 %v116
    %v760 = vunpack.c.l.b16 %v117
    %v761 = vunpack.c.h.b16 %v117
    %v762 = vunpack.c.l.b16 %v118
    %v763 = vunpack.c.h.b16 %v118
    %v764 = vunpack.c.l.b16 %v119
    %v765 = vunpack.c.h.b16 %v119
    %v766 = vunpack.c.l.b16 %v120
    %v767 = vunpack.c.h.b16 %v120
    %v768 = vunpack.c.l.b16 %v121
    %v769 = vunpack.c.h.b16 %v121
    %v770 = vunpack.c.l.b16 %v122
    %v771 = vunpack.c.h.b16 %v122
    %v772 = vunpack.c.l.b16 %v123
    %v773 = vunpack.c.h.b16 %v123
    %v774 = vunpack.c.l.b16 %v124
    %v775 = vunpack.c.h.b16 %v124
    %v776 = vunpack.c.l.b16 %v125
    %v777 = vunpack.c.h.b16 %v125
    %v778 = vunpack.c.l.b16 %v126
    %v779 = vunpack.c.h.b16 %v126
    %v780 = vunpack.c.l.b16 %v127
    %v781 = vunpack.c.h.b16 %v127
    %v782 = vunpack.c.l.b16 %v128
    %v783 = vunpack.c.h.b16 %v128
    %v784 = vunpack.c.l.b16 %v129
    %v785 = vunpack.c.h.b16 %v129
    %v786 = vunpack.c.l.b16 %v130
    %v787 = vunpack.c.h.b16 %v130
    %v788 = vunpack.c.l.b16 %v131
    %v789 = vunpack.c.h.b16 %v131
    %v790 = vunpack.c.l.b16 %v132
    %v791 = vunpack.c.h.b16 %v132
    %v792 = vunpack.c.l.b16 %v133
    %v793 = vunpack.c.h.b16 %v133
    %v794 = vunpack.c.l.b16 %v134
    %v795 = vunpack.c.h.b16 %v134
    %v796 = vunpack.c.l.b16 %v135
    %v797 = vunpack.c.h.b16 %v135
    %v798 = vunpack.c.l.b16 %v136
    %v799 = vunpack.c.h.b16 %v136
    %v800 = vunpack.c.l.b16 %v137
    %v801 = vunpack.c.h.b16 %v137
    %v802 = vunpack.c.l.b16 %v138
    %v803 = vunpack.c.h.b16 %v138
    %v804 = vunpack.c.l.b16 %v139
    %v805 = vunpack.c.h.b16 %v139
    %v806 = vunpack.c.l.b16 %v140
    %v807 = vunpack.c.h.b16 %v140
    %v808 = vunpack.c.l.b16 %v141
    %v809 = vunpack.c.h.b16 %v141
    %v810 = vunpack.c.l.b16 %v142
    %v811 = vunpack.c.h.b16 %v142
    %v812 = vunpack.c.l.b16 %v143
    %v813 = vunpack.c.h.b16 %v143
    %v814 = vunpack.c.l.b16 %v144
    %v815 = vunpack.c.h.b16 %v144
    %v816 = vunpack.c.l.b16 %v145
    %v817 = vunpack.c.h.b16 %v145
    %v818 = vunpack.c.l.b16 %v146
    %v819 = vunpack.c.h.b16 %v146
    %v820 = vunpack.c.l.b16 %v147
    %v821 = vunpack.c.h.b16 %v147
    %v822 = vunpack.c.l.b16 %v148
    %v823 = vunpack.c.h.b16 %v148
    %v824 = vunpack.c.l.b16 %v149
    %v825 = vunpack.c.h.b16 %v149
    %v826 = vunpack.c.l.b16 %v150
    %v827 = vunpack.c.h.b16 %v150
    %v828 = vunpack.c.l.b16 %v151
    %v829 = vunpack.c.h.b16 %v151
    %v830 = vunpack.c.l.b16 %v152
    %v831 = vunpack.c.h.b16 %v152
    %v832 = vunpack.c.l.b16 %v153
    %v833 = vunpack.c.h.b16 %v153
    %v834 = vunpack.c.l.b16 %v154
    %v835 = vunpack.c.h.b16 %v154
    %v836 = vunpack.c.l.b16 %v155
    %v837 = vunpack.c.h.b16 %v155
    %v838 = vunpack.c.l.b16 %v156
    %v839 = vunpack.c.h.b16 %v156
    %v840 = vunpack.c.l.b16 %v157
    %v841 = vunpack.c.h.b16 %v157
    %v842 = vunpack.c.l.b16 %v158
    %v843 = vunpack.c.h.b16 %v158
    %v844 = vunpack.c.l.b16 %v159
    %v845 = vunpack.c.h.b16 %v159
    %v846 = vunpack.c.l.b16 %v160
    %v847 = vunpack.c.h.b16 %v160
    %v848 = vunpack.c.l.b16 %v161
    %v849 = vunpack.c.h.b16 %v161
    %v850 = vunpack.c.l.b16 %v162
    %v851 = vunpack.c.h.b16 %v162
    %v852 = vunpack.c.l.b16 %v163
    %v853 = vunpack.c.h.b16 %v163
    %v854 = vunpack.c.l.b16 %v164
    %v855 = vunpack.c.h.b16 %v164
    %v856 = vunpack.c.l.b16 %v165
    %v857 = vunpack.c.h.b16 %v165
    %v858 = vunpack.c.l.b16 %v166
    %v859 = vunpack.c.h.b16 %v166
    %v860 = vunpack.c.l.b16 %v167
    %v861 = vunpack.c.h.b16 %v167
    %v862 = vunpack.c.l.b16 %v168
    %v863 = vunpack.c.h.b16 %v168
    %v864 = vunpack.c.l.b16 %v169
    %v865 = vunpack.c.h.b16 %v169
    %v866 = vunpack.c.l.b16 %v170
    %v867 = vunpack.c.h.b16 %v170
    %v868 = vunpack.c.l.b16 %v171
    %v869 = vunpack.c.h.b16 %v171
    %v870 = vunpack.c.l.b16 %v172
    %v871 = vunpack.c.h.b16 %v172
    %v872 = vunpack.c.l.b16 %v173
    %v873 = vunpack.c.h.b16 %v173
    %v874 = vunpack.c.l.b16 %v174
    %v875 = vunpack.c.h.b16 %v174
    %v876 = vunpack.c.l.b16 %v175
    %v877 = vunpack.c.h.b16 %v175
    %v878 = vunpack.c.l.b16 %v176
    %v879 = vunpack.c.h.b16 %v176
    %v880 = vunpack.c.l.b16 %v177
    %v881 = vunpack.c.h.b16 %v177
    %v882 = vunpack.c.l.b16 %v178
    %v883 = vunpack.c.h.b16 %v178
    %v884 = vunpack.c.l.b16 %v179
    %v885 = vunpack.c.h.b16 %v179
    %v886 = vunpack.c.l.b16 %v180
    %v887 = vunpack.c.h.b16 %v180
    %v888 = vunpack.c.l.b16 %v181
    %v889 = vunpack.c.h.b16 %v181
    %v890 = vunpack.c.l.b16 %v182
    %v891 = vunpack.c.h.b16 %v182
    %v892 = vunpack.c.l.b16 %v183
    %v893 = vunpack.c.h.b16 %v183
    %v894 = vunpack.c.l.b16 %v184
    %v895 = vunpack.c.h.b16 %v184
    %v896 = vunpack.c.l.b16 %v185
    %v897 = vunpack.c.h.b16 %v185
    %v898 = vunpack.c.l.b16 %v186
    %v899 = vunpack.c.h.b16 %v186
    %v900 = vunpack.c.l.b16 %v187
    %v901 = vunpack.c.h.b16 %v187
    %v902 = vunpack.c.l.b16 %v188
    %v903 = vunpack.c.h.b16 %v188
    %v904 = vunpack.c.l.b16 %v189
    %v905 = vunpack.c.h.b16 %v189
    %v906 = vunpack.c.l.b16 %v190
    %v907 = vunpack.c.h.b16 %v190
    %v908 = vunpack.c.l.b16 %v191
    %v909 = vunpack.c.h.b16 %v191
    %v910 = vunpack.c.l.b16 %v192
    %v911 = vunpack.c.h.b16 %v192
    %v912 = vunpack.c.l.b16 %v193
    %v913 = vunpack.c.h.b16 %v193
    %v914 = vunpack.c.l.b16 %v194
    %v915 = vunpack.c.h.b16 %v194
    %v916 = vunpack.c.l.b16 %v195
    %v917 = vunpack.c.h.b16 %v195
    %v918 = vunpack.c.l.b16 %v196
    %v919 = vunpack.c.h.b16 %v196
    %v920 = vunpack.c.l.b16 %v197
    %v921 = vunpack.c.h.b16 %v197
    %v922 = vunpack.c.l.b16 %v198
    %v923 = vunpack.c.h.b16 %v198
    %v924 = vunpack.c.l.b16 %v199
    %v925 = vunpack.c.h.b16 %v199
    %v926 = vunpack.c.l.b16 %v200
    %v927 = vunpack.c.h.b16 %v200
    %v928 = vunpack.c.l.b16 %v201
    %v929 = vunpack.c.h.b16 %v201
    %v930 = vunpack.c.l.b16 %v202
    %v931 = vunpack.c.h.b16 %v202
    %v932 = vunpack.c.l.b16 %v203
    %v933 = vunpack.c.h.b16 %v203
    %v934 = vunpack.c.l.b16 %v204
    %v935 = vunpack.c.h.b16 %v204
    %v936 = vunpack.c.l.b16 %v205
    %v937 = vunpack.c.h.b16 %v205
    %v938 = vunpack.c.l.b16 %v206
    %v939 = vunpack.c.h.b16 %v206
    %v940 = vunpack.c.l.b16 %v207
    %v941 = vunpack.c.h.b16 %v207
    %v942 = vunpack.c.l.b16 %v208
    %v943 = vunpack.c.h.b16 %v208
    %v944 = vunpack.c.l.b16 %v209
    %v945 = vunpack.c.h.b16 %v209
    %v946 = vunpack.c.l.b16 %v210
    %v947 = vunpack.c.h.b16 %v210
    %v948 = vunpack.c.l.b16 %v211
    %v949 = vunpack.c.h.b16 %v211
    %v950 = vunpack.c.l.b16 %v212
    %v951 = vunpack.c.h.b16 %v212
    %v952 = vunpack.c.l.b16 %v213
    %v953 = vunpack.c.h.b16 %v213
    %v954 = vunpack.c.l.b16 %v214
    %v955 = vunpack.c.h.b16 %v214
    %v956 = vunpack.c.l.b16 %v215
    %v957 = vunpack.c.h.b16 %v215
    %v958 = vunpack.c.l.b16 %v216
    %v959 = vunpack.c.h.b16 %v216
    %v960 = vunpack.c.l.b16 %v217
    %v961 = vunpack.c.h.b16 %v217
    %v962 = vunpack.c.l.b16 %v218
    %v963 = vunpack.c.h.b16 %v218
    %v964 = vunpack.c.l.b16 %v219
    %v965 = vunpack.c.h.b16 %v219
    %v966 = vunpack.c.l.b16 %v220
    %v967 = vunpack.c.h.b16 %v220
    %v968 = vunpack.c.l.b16 %v221
    %v969 = vunpack.c.h.b16 %v221
    %v970 = vunpack.c.l.b16 %v222
    %v971 = vunpack.c.h.b16 %v222
    %v972 = vunpack.c.l.b16 %v223
    %v973 = vunpack.c.h.b16 %v223
    %v974 = vunpack.c.l.b16 %v224
    %v975 = vunpack.c.h.b16 %v224
    %v976 = vunpack.c.l.b16 %v225
    %v977 = vunpack.c.h.b16 %v225
    %v978 = vunpack.c.l.b16 %v226
    %v979 = vunpack.c.h.b16 %v226
    %v980 = vunpack.c.l.b16 %v227
    %v981 = vunpack.c.h.b16 %v227
    %v982 = vunpack.c.l.b16 %v228
    %v983 = vunpack.c.h.b16 %v228
    %v984 = vunpack.c.l.b16 %v229
    %v985 = vunpack.c.h.b16 %v229
    %v986 = vunpack.c.l.b16 %v230
    %v987 = vunpack.c.h.b16 %v230
    %v988 = vunpack.c.l.b16 %v231
    %v989 = vunpack.c.h.b16 %v231
    %v990 = vunpack.c.l.b16 %v232
    %v991 = vunpack.c.h.b16 %v232
    %v992 = vunpack.c.l.b16 %v233
    %v993 = vunpack.c.h.b16 %v233
    %v994 = vunpack.c.l.b16 %v234
    %v995 = vunpack.c.h.b16 %v234
    %v996 = vunpack.c.l.b16 %v235
    %v997 = vunpack.c.h.b16 %v235
    %v998 = vunpack.c.l.b16 %v236
    %v999 = vunpack.c.h.b16 %v236
    %v1000 = vunpack.c.l.b16 %v237
    %v1001 = vunpack.c.h.b16 %v237
    %v1002 = vunpack.c.l.b16 %v238
    %v1003 = vunpack.c.h.b16 %v238
    %v1004 = vunpack.c.l.b16 %v239
    %v1005 = vunpack.c.h.b16 %v239
    %v1006 = vunpack.c.l.b16 %v240
    %v1007 = vunpack.c.h.b16 %v240
    %v1008 = vunpack.c.l.b16 %v241
    %v1009 = vunpack.c.h.b16 %v241
    %v1010 = vunpack.c.l.b16 %v242
    %v1011 = vunpack.c.h.b16 %v242
    %v1012 = vunpack.c.l.b16 %v243
    %v1013 = vunpack.c.h.b16 %v243
    %v1014 = vunpack.c.l.b16 %v244
    %v1015 = vunpack.c.h.b16 %v244
    %v1016 = vunpack.c.l.b16 %v245
    %v1017 = vunpack.c.h.b16 %v245
    %v1018 = vunpack.c.l.b16 %v246
    %v1019 = vunpack.c.h.b16 %v246
    %v1020 = vunpack.c.l.b16 %v247
    %v1021 = vunpack.c.h.b16 %v247
    %v1022 = vunpack.c.l.b16 %v248
    %v1023 = vunpack.c.h.b16 %v248
    %v1024 = vunpack.c.l.b16 %v249
    %v1025 = vunpack.c.h.b16 %v249
    %v1026 = vunpack.c.l.b16 %v250
    %v1027 = vunpack.c.h.b16 %v250
    %v1028 = vunpack.c.l.b16 %v251
    %v1029 = vunpack.c.h.b16 %v251
    %v1030 = vunpack.c.l.b16 %v252
    %v1031 = vunpack.c.h.b16 %v252
    %v1032 = vunpack.c.l.b16 %v253
    %v1033 = vunpack.c.h.b16 %v253
    %v1034 = vunpack.c.l.b16 %v254
    %v1035 = vunpack.c.h.b16 %v254
    %v1036 = vunpack.c.l.b16 %v255
    %v1037 = vunpack.c.h.b16 %v255
    %v1038 = vunpack.c.l.b16 %v256
    %v1039 = vunpack.c.h.b16 %v256
    %v1040 = vunpack.c.l.b16 %v257
    %v1041 = vunpack.c.h.b16 %v257
    %v1042 = vunpack.c.l.b16 %v258
    %v1043 = vunpack.c.h.b16 %v258
    %v1044 = vunpack.c.l.b16 %v259
    %v1045 = vunpack.c.h.b16 %v259
    %v1046 = vunpack.c.l.b16 %v260
    %v1047 = vunpack.c.h.b16 %v260
    %v1048 = vunpack.c.l.b16 %v261
    %v1049 = vunpack.c.h.b16 %v261
    %v1050 = vunpack.c.l.b16 %v262
    %v1051 = vunpack.c.h.b16 %v262
    %v1052 = vunpack.c.l.b16 %v263
    %v1053 = vunpack.c.h.b16 %v263
    %v1054 = vunpack.c.l.b16 %v264
    %v1055 = vunpack.c.h.b16 %v264
    %v1056 = vunpack.c.l.b16 %v265
    %v1057 = vunpack.c.h.b16 %v265
    %v1058 = vunpack.c.l.b16 %v266
    %v1059 = vunpack.c.h.b16 %v266
    %v1060 = vunpack.c.l.b16 %v267
    %v1061 = vunpack.c.h.b16 %v267
    %v1062 = vunpack.c.l.b16 %v268
    %v1063 = vunpack.c.h.b16 %v268
    %v1064 = vunpack.c.l.b16 %v269
    %v1065 = vunpack.c.h.b16 %v269
    %v1066 = vunpack.c.l.b16 %v270
    %v1067 = vunpack.c.h.b16 %v270
    %v1068 = vunpack.c.l.b16 %v271
    %v1069 = vunpack.c.h.b16 %v271
    %v1070 = vunpack.c.l.b16 %v272
    %v1071 = vunpack.c.h.b16 %v272
    %v1072 = vunpack.c.l.b16 %v273
    %v1073 = vunpack.c.h.b16 %v273
    %v1074 = vunpack.c.l.b16 %v274
    %v1075 = vunpack.c.h.b16 %v274
    %v1076 = vunpack.c.l.b16 %v275
    %v1077 = vunpack.c.h.b16 %v275
    %v1078 = vunpack.c.l.b16 %v276
    %v1079 = vunpack.c.h.b16 %v276
    %v1080 = vunpack.c.l.b16 %v277
    %v1081 = vunpack.c.h.b16 %v277
    %v1082 = vunpack.c.l.b16 %v278
    %v1083 = vunpack.c.h.b16 %v278
    %v1084 = vunpack.c.l.b16 %v279
    %v1085 = vunpack.c.h.b16 %v279
    %v1086 = vunpack.c.l.b16 %v280
    %v1087 = vunpack.c.h.b16 %v280
    %v1088 = vunpack.c.l.b16 %v281
    %v1089 = vunpack.c.h.b16 %v281
    %v1090 = vunpack.c.l.b16 %v282
    %v1091 = vunpack.c.h.b16 %v282
    %v1092 = vunpack.c.l.b16 %v283
    %v1093 = vunpack.c.h.b16 %v283
    %v1094 = vunpack.c.l.b16 %v284
    %v1095 = vunpack.c.h.b16 %v284
    %v1096 = vunpack.c.l.b16 %v285
    %v1097 = vunpack.c.h.b16 %v285
    %v1098 = vunpack.c.l.b16 %v286
    %v1099 = vunpack.c.h.b16 %v286
    %v1100 = vunpack.c.l.b16 %v287
    %v1101 = vunpack.c.h.b16 %v287
    %v1102 = vunpack.c.l.b16 %v288
    %v1103 = vunpack.c.h.b16 %v288
    %v1104 = vunpack.c.l.b16 %v289
    %v1105 = vunpack.c.h.b16 %v289
    %v1106 = vunpack.c.l.b16 %v290
    %v1107 = vunpack.c.h.b16 %v290
    %v1108 = vunpack.c.l.b16 %v291
    %v1109 = vunpack.c.h.b16 %v291
    %v1110 = vunpack.c.l.b16 %v292
    %v1111 = vunpack.c.h.b16 %v292
    %v1112 = vunpack.c.l.b16 %v293
    %v1113 = vunpack.c.h.b16 %v293
    %v1114 = vunpack.c.l.b16 %v294
    %v1115 = vunpack.c.h.b16 %v294
    %v1116 = vunpack.c.l.b16 %v295
    %v1117 = vunpack.c.h.b16 %v295
    %v1118 = vunpack.c.l.b16 %v296
    %v1119 = vunpack.c.h.b16 %v296
    %v1120 = vunpack.c.l.b16 %v297
    %v1121 = vunpack.c.h.b16 %v297
    %v1122 = vunpack.c.l.b16 %v298
    %v1123 = vunpack.c.h.b16 %v298
    %v1124 = vunpack.c.l.b16 %v299
    %v1125 = vunpack.c.h.b16 %v299
    %v1126 = vunpack.c.l.b16 %v300
    %v1127 = vunpack.c.h.b16 %v300
    %v1128 = vunpack.c.l.b16 %v301
    %v1129 = vunpack.c.h.b16 %v301
    %v1130 = vunpack.c.l.b16 %v302
    %v1131 = vunpack.c.h.b16 %v302
    %v1132 = vunpack.c.l.b16 %v303
    %v1133 = vunpack.c.h.b16 %v303
    %v1134 = vunpack.c.l.b16 %v304
    %v1135 = vunpack.c.h.b16 %v304
    %v1136 = vunpack.c.l.b16 %v305
    %v1137 = vunpack.c.h.b16 %v305
    %v1138 = vunpack.c.l.b16 %v306
    %v1139 = vunpack.c.h.b16 %v306
    %v1140 = vunpack.c.l.b16 %v307
    %v1141 = vunpack.c.h.b16 %v307
    %v1142 = vunpack.c.l.b16 %v308
    %v1143 = vunpack.c.h.b16 %v308
    %v1144 = vunpack.c.l.b16 %v309
    %v1145 = vunpack.c.h.b16 %v309
    %v1146 = vunpack.c.l.b16 %v310
    %v1147 = vunpack.c.h.b16 %v310
    %v1148 = vunpack.c.l.b16 %v311
    %v1149 = vunpack.c.h.b16 %v311
    %v1150 = vunpack.c.l.b16 %v312
    %v1151 = vunpack.c.h.b16 %v312
    %v1152 = vunpack.c.l.b16 %v313
    %v1153 = vunpack.c.h.b16 %v313
    %v1154 = vunpack.c.l.b16 %v314
    %v1155 = vunpack.c.h.b16 %v314
    %v1156 = vunpack.c.l.b16 %v315
    %v1157 = vunpack.c.h.b16 %v315
    %v1158 = vunpack.c.l.b16 %v316
    %v1159 = vunpack.c.h.b16 %v316
    %v1160 = vunpack.c.l.b16 %v317
    %v1161 = vunpack.c.h.b16 %v317
    %v1162 = vunpack.c.l.b16 %v318
    %v1163 = vunpack.c.h.b16 %v318
    %v1164 = vunpack.c.l.b16 %v319
    %v1165 = vunpack.c.h.b16 %v319
    %v1166 = vunpack.c.l.b16 %v320
    %v1167 = vunpack.c.h.b16 %v320
    %v1168 = vunpack.c.l.b16 %v321
    %v1169 = vunpack.c.h.b16 %v321
    %v1170 = vunpack.c.l.b16 %v322
    %v1171 = vunpack.c.h.b16 %v322
    %v1172 = vunpack.c.l.b16 %v323
    %v1173 = vunpack.c.h.b16 %v323
    %v1174 = vunpack.c.l.b16 %v324
    %v1175 = vunpack.c.h.b16 %v324
    %v1176 = vunpack.c.l.b16 %v325
    %v1177 = vunpack.c.h.b16 %v325
    %v1178 = vunpack.c.l.b16 %v326
    %v1179 = vunpack.c.h.b16 %v326
    %v1180 = vunpack.c.l.b16 %v327
    %v1181 = vunpack.c.h.b16 %v327
    %v1182 = vunpack.c.l.b16 %v328
    %v1183 = vunpack.c.h.b16 %v328
    %v1184 = vunpack.c.l.b16 %v329
    %v1185 = vunpack.c.h.b16 %v329
    %v1186 = vunpack.c.l.b16 %v330
    %v1187 = vunpack.c.h.b16 %v330
    %v1188 = vunpack.c.l.b16 %v331
    %v1189 = vunpack.c.h.b16 %v331
    %v1190 = vunpack.c.l.b16 %v332
    %v1191 = vunpack.c.h.b16 %v332
    %v1192 = vunpack.c.l.b16 %v333
    %v1193 = vunpack.c.h.b16 %v333
    %v1194 = vunpack.c.l.b16 %v334
    %v1195 = vunpack.c.h.b16 %v334
    %v1196 = vunpack.c.l.b16 %v335
    %v1197 = vunpack.c.h.b16 %v335
    %v1198 = vunpack.c.l.b16 %v336
    %v1199 = vunpack.c.h.b16 %v336
    %v1200 = vunpack.c.l.b16 %v337
    %v1201 = vunpack.c.h.b16 %v337
    %v1202 = vunpack.c.l.b16 %v338
    %v1203 = vunpack.c.h.b16 %v338
    %v1204 = vunpack.c.l.b16 %v339
    %v1205 = vunpack.c.h.b16 %v339
    %v1206 = vunpack.c.l.b16 %v340
    %v1207 = vunpack.c.h.b16 %v340
    %v1208 = vunpack.c.l.b16 %v341
    %v1209 = vunpack.c.h.b16 %v341
    %v1210 = vunpack.c.l.b16 %v342
    %v1211 = vunpack.c.h.b16 %v342
    %v1212 = vunpack.c.l.b16 %v343
    %v1213 = vunpack.c.h.b16 %v343
    %v1214 = vunpack.c.l.b16 %v344
    %v1215 = vunpack.c.h.b16 %v344
    %v1216 = vunpack.c.l.b16 %v345
    %v1217 = vunpack.c.h.b16 %v345
    %v1218 = vunpack.c.l.b16 %v346
    %v1219 = vunpack.c.h.b16 %v346
    %v1220 = vunpack.c.l.b16 %v347
    %v1221 = vunpack.c.h.b16 %v347
    %v1222 = vunpack.c.l.b16 %v348
    %v1223 = vunpack.c.h.b16 %v348
    %v1224 = vunpack.c.l.b16 %v349
    %v1225 = vunpack.c.h.b16 %v349
    %v1226 = vunpack.c.l.b16 %v350
    %v1227 = vunpack.c.h.b16 %v350
    %v1228 = vunpack.c.l.b16 %v351
    %v1229 = vunpack.c.h.b16 %v351
    %v1230 = vunpack.c.l.b16 %v352
    %v1231 = vunpack.c.h.b16 %v352
    %v1232 = vunpack.c.l.b16 %v353
    %v1233 = vunpack.c.h.b16 %v353
    %v1234 = vunpack.c.l.b16 %v354
    %v1235 = vunpack.c.h.b16 %v354
    %v1236 = vunpack.c.l.b16 %v355
    %v1237 = vunpack.c.h.b16 %v355
    %v1238 = vunpack.c.l.b16 %v356
    %v1239 = vunpack.c.h.b16 %v356
    %v1240 = vunpack.c.l.b16 %v357
    %v1241 = vunpack.c.h.b16 %v357
    %v1242 = vunpack.c.l.b16 %v358
    %v1243 = vunpack.c.h.b16 %v358
    %v1244 = vunpack.c.l.b16 %v359
    %v1245 = vunpack.c.h.b16 %v359
    %v1246 = vunpack.c.l.b16 %v360
    %v1247 = vunpack.c.h.b16 %v360
    %v1248 = vunpack.c.l.b16 %v361
    %v1249 = vunpack.c.h.b16 %v361
    %v1250 = vunpack.c.l.b16 %v362
    %v1251 = vunpack.c.h.b16 %v362
    %v1252 = vunpack.c.l.b16 %v363
    %v1253 = vunpack.c.h.b16 %v363
    %v1254 = vunpack.c.l.b16 %v364
    %v1255 = vunpack.c.h.b16 %v364
    %v1256 = vunpack.c.l.b16 %v365
    %v1257 = vunpack.c.h.b16 %v365
    %v1258 = vunpack.c.l.b16 %v366
    %v1259 = vunpack.c.h.b16 %v366
    %v1260 = vunpack.c.l.b16 %v367
    %v1261 = vunpack.c.h.b16 %v367
    %v1262 = vunpack.c.l.b16 %v368
    %v1263 = vunpack.c.h.b16 %v368
    %v1264 = vunpack.c.l.b16 %v369
    %v1265 = vunpack.c.h.b16 %v369
    %v1266 = vpack.c.b16 %v696, %v690
    %v1267 = vpack.c.b16 %v697, %v691
    %v1268 = vpack.c.b16 %v698, %v692
    %v1269 = vpack.c.b16 %v699, %v693
    %v1270 = vpack.c.b16 %v700, %v694
    %v1271 = vpack.c.b16 %v701, %v695
    %v1272 = vpack.c.b16 %v708, %v702
    %v1273 = vpack.c.b16 %v709, %v703
    %v1274 = vpack.c.b16 %v710, %v704
    %v1275 = vpack.c.b16 %v711, %v705
    %v1276 = vpack.c.b16 %v712, %v706
    %v1277 = vpack.c.b16 %v713, %v707
    %v1278 = vpack.c.b16 %v720, %v714
    %v1279 = vpack.c.b16 %v721, %v715
    %v1280 = vpack.c.b16 %v722, %v716
    %v1281 = vpack.c.b16 %v723, %v717
    %v1282 = vpack.c.b16 %v724, %v718
    %v1283 = vpack.c.b16 %v725, %v719
    %v1284 = vpack.c.b16 %v732, %v726
    %v1285 = vpack.c.b16 %v733, %v727
    %v1286 = vpack.c.b16 %v734, %v728
    %v1287 = vpack.c.b16 %v735, %v729
    %v1288 = vpack.c.b16 %v736, %v730
    %v1289 = vpack.c.b16 %v737, %v731
    %v1290 = vpack.c.b16 %v744, %v738
    %v1291 = vpack.c.b16 %v745, %v739
    %v1292 = vpack.c.b16 %v746, %v740
    %v1293 = vpack.c.b16 %v747, %v741
    %v1294 = vpack.c.b16 %v748, %v742
    %v1295 = vpack.c.b16 %v749, %v743
    %v1296 = vpack.c.b16 %v756, %v750
    %v1297 = vpack.c.b16 %v757, %v751
    %v1298 = vpack.c.b16 %v758, %v752
    %v1299 = vpack.c.b16 %v759, %v753
    %v1300 = vpack.c.b16 %v760, %v754
    %v1301 = vpack.c.b16 %v761, %v755
    %v1302 = vpack.c.b16 %v768, %v762
    %v1303 = vpack.c.b16 %v769, %v763
    %v1304 = vpack.c.b16 %v770, %v764
    %v1305 = vpack.c.b16 %v771, %v765
    %v1306 = vpack.c.b16 %v772, %v766
    %v1307 = vpack.c.b16 %v773, %v767
    %v1308 = vpack.c.b16 %v780, %v774
    %v1309 = vpack.c.b16 %v781, %v775
    %v1310 = vpack.c.b16 %v782, %v776
    %v1311 = vpack.c.b16 %v783, %v777
    %v1312 = vpack.c.b16 %v784, %v778
    %v1313 = vpack.c.b16 %v785, %v779
    %v1314 = vpack.c.b16 %v792, %v786
    %v1315 = vpack.c.b16 %v793, %v787
    %v1316 = vpack.c.b16 %v794, %v788
    %v1317 = vpack.c.b16 %v795, %v789
    %v1318 = vpack.c.b16 %v796, %v790
    %v1319 = vpack.c.b16 %v797, %v791
    %v1320 = vpack.c.b16 %v804, %v798
    %v1321 = vpack.c.b16 %v805, %v799
    %v1322 = vpack.c.b16 %v806, %v800
    %v1323 = vpack.c.b16 %v807, %v801
    %v1324 = vpack.c.b16 %v808, %v802
    %v1325 = vpack.c.b16 %v809, %v803
    %v1326 = vpack.c.b16 %v816, %v810
    %v1327 = vpack.c.b16 %v817, %v811
    %v1328 = vpack.c.b16 %v818, %v812
    %v1329 = vpack.c.b16 %v819, %v813
    %v1330 = vpack.c.b16 %v820, %v814
    %v1331 = vpack.c.b16 %v821, %v815
    %v1332 = vpack.c.b16 %v828, %v822
    %v1333 = vpack.c.b16 %v829, %v823
    %v1334 = vpack.c.b16 %v830, %v824
    %v1335 = vpack.c.b16 %v831, %v825
    %v1336 = vpack.c.b16 %v832, %v826
    %v1337 = vpack.c.b16 %v833, %v827
    %v1338 = vpack.c.b16 %v840, %v834
    %v1339 = vpack.c.b16 %v841, %v835
    %v1340 = vpack.c.b16 %v842, %v836
    %v1341 = vpack.c.b16 %v843, %v837
    %v1342 = vpack.c.b16 %v844, %v838
    %v1343 = vpack.c.b16 %v845, %v839
    %v1344 = vpack.c.b16 %v852, %v846
    %v1345 = vpack.c.b16 %v853, %v847
    %v1346 = vpack.c.b16 %v854, %v848
    %v1347 = vpack.c.b16 %v855, %v849
    %v1348 = vpack.c.b16 %v856, %v850
    %v1349 = vpack.c.b16 %v857, %v851
    %v1350 = vpack.c.b16 %v864, %v858
    %v1351 = vpack.c.b16 %v865, %v859
    %v1352 = vpack.c.b16 %v866, %v860
    %v1353 = vpack.c.b16 %v867, %v861
    %v1354 = vpack.c.b16 %v868, %v862
    %v1355 = vpack.c.b16 %v869, %v863
    %v1356 = vpack.c.b16 %v876, %v870
    %v1357 = vpack.c.b16 %v877, %v871
    %v1358 = vpack.c.b16 %v878, %v872
    %v1359 = vpack.c.b16 %v879, %v873
    %v1360 = vpack.c.b16 %v880, %v874
    %v1361 = vpack.c.b16 %v881, %v875
    %v1362 = vpack.c.b16 %v888, %v882
    %v1363 = vpack.c.b16 %v889, %v883
    %v1364 = vpack.c.b16 %v890, %v884
    %v1365 = vpack.c.b16 %v891, %v885
    %v1366 = vpack.c.b16 %v892, %v886
    %v1367 = vpack.c.b16 %v893, %v887
    %v1368 = vpack.c.b16 %v900, %v894
    %v1369 = vpack.c.b16 %v901, %v895
    %v1370 = vpack.c.b16 %v902, %v896
    %v1371 = vpack.c.b16 %v903, %v897
    %v1372 = vpack.c.b16 %v904, %v898
    %v1373 = vpack.c.b16 %v905, %v899
    %v1374 = vpack.c.b16 %v912, %v906
    %v1375 = vpack.c.b16 %v913, %v907
    %v1376 = vpack.c.b16 %v914, %v908
    %v1377 = vpack.c.b16 %v915, %v909
    %v1378 = vpack.c.b16 %v916, %v910
    %v1379 = vpack.c.b16 %v917, %v911
    %v1380 = vpack.c.b16 %v924, %v918
    %v1381 = vpack.c.b16 %v925, %v919
    %v1382 = vpack.c.b16 %v926, %v920
    %v1383 = vpack.c.b16 %v927, %v921
    %v1384 = vpack.c.b16 %v928, %v922
    %v1385 = vpack.c.b16 %v929, %v923
    %v1386 = vpack.c.b16 %v936, %v930
    %v1387 = vpack.c.b16 %v937, %v931
    %v1388 = vpack.c.b16 %v938, %v932
    %v1389 = vpack.c.b16 %v939, %v933
    %v1390 = vpack.c.b16 %v940, %v934
    %v1391 = vpack.c.b16 %v941, %v935
    %v1392 = vpack.c.b16 %v948, %v942
    %v1393 = vpack.c.b16 %v949, %v943
    %v1394 = vpack.c.b16 %v950, %v944
    %v1395 = vpack.c.b16 %v951, %v945
    %v1396 = vpack.c.b16 %v952, %v946
    %v1397 = vpack.c.b16 %v953, %v947
    %v1398 = vpack.c.b16 %v960, %v954
    %v1399 = vpack.c.b16 %v961, %v955
    %v1400 = vpack.c.b16 %v962, %v956
    %v1401 = vpack.c.b16 %v963, %v957
    %v1402 = vpack.c.b16 %v964, %v958
    %v1403 = vpack.c.b16 %v965, %v959
    %v1404 = vpack.c.b16 %v972, %v966
    %v1405 = vpack.c.b16 %v973, %v967
    %v1406 = vpack.c.b16 %v974, %v968
    %v1407 = vpack.c.b16 %v975, %v969
    %v1408 = vpack.c.b16 %v976, %v970
    %v1409 = vpack.c.b16 %v977, %v971
    %v1410 = vpack.c.b16 %v984, %v978
    %v1411 = vpack.c.b16 %v985, %v979
    %v1412 = vpack.c.b16 %v986, %v980
    %v1413 = vpack.c.b16 %v987, %v981
    %v1414 = vpack.c.b16 %v988, %v982
    %v1415 = vpack.c.b16 %v989, %v983
    %v1416 = vpack.c.b16 %v996, %v990
    %v1417 = vpack.c.b16 %v997, %v991
    %v1418 = vpack.c.b16 %v998, %v992
    %v1419 = vpack.c.b16 %v999, %v993
    %v1420 = vpack.c.b16 %v1000, %v994
    %v1421 = vpack.c.b16 %v1001, %v995
    %v1422 = vpack.c.b16 %v1008, %v1002
    %v1423 = vpack.c.b16 %v1009, %v1003
    %v1424 = vpack.c.b16 %v1010, %v1004
    %v1425 = vpack.c.b16 %v1011, %v1005
    %v1426 = vpack.c.b16 %v1012, %v1006
    %v1427 = vpack.c.b16 %v1013, %v1007
    %v1428 = vpack.c.b16 %v1020, %v1014
    %v1429 = vpack.c.b16 %v1021, %v1015
    %v1430 = vpack.c.b16 %v1022, %v1016
    %v1431 = vpack.c.b16 %v1023, %v1017
    %v1432 = vpack.c.b16 %v1024, %v1018
    %v1433 = vpack.c.b16 %v1025, %v1019
    %v1434 = vpack.c.b16 %v1032, %v1026
    %v1435 = vpack.c.b16 %v1033, %v1027
    %v1436 = vpack.c.b16 %v1034, %v1028
    %v1437 = vpack.c.b16 %v1035, %v1029
    %v1438 = vpack.c.b16 %v1036, %v1030
    %v1439 = vpack.c.b16 %v1037, %v1031
    %v1440 = vpack.c.b16 %v1044, %v1038
    %v1441 = vpack.c.b16 %v1045, %v1039
    %v1442 = vpack.c.b16 %v1046, %v1040
    %v1443 = vpack.c.b16 %v1047, %v1041
    %v1444 = vpack.c.b16 %v1048, %v1042
    %v1445 = vpack.c.b16 %v1049, %v1043
    %v1446 = vpack.c.b16 %v1056, %v1050
    %v1447 = vpack.c.b16 %v1057, %v1051
    %v1448 = vpack.c.b16 %v1058, %v1052
    %v1449 = vpack.c.b16 %v1059, %v1053
    %v1450 = vpack.c.b16 %v1060, %v1054
    %v1451 = vpack.c.b16 %v1061, %v1055
    %v1452 = vpack.c.b16 %v1068, %v1062
    %v1453 = vpack.c.b16 %v1069, %v1063
    %v1454 = vpack.c.b16 %v1070, %v1064
    %v1455 = vpack.c.b16 %v1071, %v1065
    %v1456 = vpack.c.b16 %v1072, %v1066
    %v1457 = vpack.c.b16 %v1073, %v1067
    %v1458 = vpack.c.b16 %v1080, %v1074
    %v1459 = vpack.c.b16 %v1081, %v1075
    %v1460 = vpack.c.b16 %v1082, %v1076
    %v1461 = vpack.c.b16 %v1083, %v1077
    %v1462 = vpack.c.b16 %v1084, %v1078
    %v1463 = vpack.c.b16 %v1085, %v1079
    %v1464 = vpack.c.b16 %v1092, %v1086
    %v1465 = vpack.c.b16 %v1093, %v1087
    %v1466 = vpack.c.b16 %v1094, %v1088
    %v1467 = vpack.c.b16 %v1095, %v1089
    %v1468 = vpack.c.b16 %v1096, %v1090
    %v1469 = vpack.c.b16 %v1097, %v1091
    %v1470 = vpack.c.b16 %v1104, %v1098
    %v1471 = vpack.c.b16 %v1105, %v1099
    %v1472 = vpack.c.b16 %v1106, %v1100
    %v1473 = vpack.c.b16 %v1107, %v1101
    %v1474 = vpack.c.b16 %v1108, %v1102
    %v1475 = vpack.c.b16 %v1109, %v1103
    %v1476 = vpack.c.b16 %v1116, %v1110
    %v1477 = vpack.c.b16 %v1117, %v1111
    %v1478 = vpack.c.b16 %v1118, %v1112
    %v1479 = vpack.c.b16 %v1119, %v1113
    %v1480 = vpack.c.b16 %v1120, %v1114
    %v1481 = vpack.c.b16 %v1121, %v1115
    %v1482 = vpack.c.b16 %v1128, %v1122
    %v1483 = vpack.c.b16 %v1129, %v1123
    %v1484 = vpack.c.b16 %v1130, %v1124
    %v1485 = vpack.c.b16 %v1131, %v1125
    %v1486 = vpack.c.b16 %v1132, %v1126
    %v1487 = vpack.c.b16 %v1133, %v1127
    %v1488 = vpack.c.b16 %v1140, %v1134
    %v1489 = vpack.c.b16 %v1141, %v1135
    %v1490 = vpack.c.b16 %v1142, %v1136
    %v1491 = vpack.c.b16 %v1143, %v1137
    %v1492 = vpack.c.b16 %v1144, %v1138
    %v1493 = vpack.c.b16 %v1145, %v1139
    %v1494 = vpack.c.b16 %v1152, %v1146
    %v1495 = vpack.c.b16 %v1153, %v1147
    %v1496 = vpack.c.b16 %v1154, %v1148
    %v1497 = vpack.c.b16 %v1155, %v1149
    %v1498 = vpack.c.b16 %v1156, %v1150
    %v1499 = vpack.c.b16 %v1157, %v1151
    %v1500 = vpack.c.b16 %v1164, %v1158
    %v1501 = vpack.c.b16 %v1165, %v1159
    %v1502 = vpack.c.b16 %v1166, %v1160
    %v1503 = vpack.c.b16 %v1167, %v1161
    %v1504 = vpack.c.b16 %v1168, %v1162
    %v1505 = vpack.c.b16 %v1169, %v1163
    %v1506 = vpack.c.b16 %v1176, %v1170
    %v1507 = vpack.c.b16 %v1177, %v1171
    %v1508 = vpack.c.b16 %v1178, %v1172
    %v1509 = vpack.c.b16 %v1179, %v1173
    %v1510 = vpack.c.b16 %v1180, %v1174
    %v1511 = vpack.c.b16 %v1181, %v1175
    %v1512 = vpack.c.b16 %v1188, %v1182
    %v1513 = vpack.c.b16 %v1189, %v1183
    %v1514 = vpack.c.b16 %v1190, %v1184
    %v1515 = vpack.c.b16 %v1191, %v1185
    %v1516 = vpack.c.b16 %v1192, %v1186
    %v1517 = vpack.c.b16 %v1193, %v1187
    %v1518 = vpack.c.b16 %v1200, %v1194
    %v1519 = vpack.c.b16 %v1201, %v1195
    %v1520 = vpack.c.b16 %v1202, %v1196
    %v1521 = vpack.c.b16 %v1203, %v1197
    %v1522 = vpack.c.b16 %v1204, %v1198
    %v1523 = vpack.c.b16 %v1205, %v1199
    %v1524 = vpack.c.b16 %v1212, %v1206
    %v1525 = vpack.c.b16 %v1213, %v1207
    %v1526 = vpack.c.b16 %v1214, %v1208
    %v1527 = vpack.c.b16 %v1215, %v1209
    %v1528 = vpack.c.b16 %v1216, %v1210
    %v1529 = vpack.c.b16 %v1217, %v1211
    %v1530 = vpack.c.b16 %v1224, %v1218
    %v1531 = vpack.c.b16 %v1225, %v1219
    %v1532 = vpack.c.b16 %v1226, %v1220
    %v1533 = vpack.c.b16 %v1227, %v1221
    %v1534 = vpack.c.b16 %v1228, %v1222
    %v1535 = vpack.c.b16 %v1229, %v1223
    %v1536 = vpack.c.b16 %v1236, %v1230
    %v1537 = vpack.c.b16 %v1237, %v1231
    %v1538 = vpack.c.b16 %v1238, %v1232
    %v1539 = vpack.c.b16 %v1239, %v1233
    %v1540 = vpack.c.b16 %v1240, %v1234
    %v1541 = vpack.c.b16 %v1241, %v1235
    %v1542 = vpack.c.b16 %v1248, %v1242
    %v1543 = vpack.c.b16 %v1249, %v1243
    %v1544 = vpack.c.b16 %v1250, %v1244
    %v1545 = vpack.c.b16 %v1251, %v1245
    %v1546 = vpack.c.b16 %v1252, %v1246
    %v1547 = vpack.c.b16 %v1253, %v1247
    %v1548 = vpack.c.b16 %v1260, %v1254
    %v1549 = vpack.c.b16 %v1261, %v1255
    %v1550 = vpack.c.b16 %v1262, %v1256
    %v1551 = vpack.c.b16 %v1263, %v1257
    %v1552 = vpack.c.b16 %v1264, %v1258
    %v1553 = vpack.c.b16 %v1265, %v1259
    %1842 = vmatprep.subr.bf16.mxu0 %v1267
    %1843 = vmatpush1.bf16.msra.mxu0 %v1266
    %1844 = vmatprep.subr.bf16.mxu0 %v1273
    %1845 = vmatpush1.bf16.msra.mxu0 %v1272
    %1846 = vmatprep.subr.bf16.mxu0 %v1279
    %1847 = vmatpush1.bf16.msra.mxu0 %v1278
    %1848 = vmatprep.subr.bf16.mxu0 %v1285
    %1849 = vmatpush1.bf16.msra.mxu0 %v1284
    %1850 = vmatprep.subr.bf16.mxu0 %v1291
    %1851 = vmatpush1.bf16.msra.mxu0 %v1290
    %1852 = vmatprep.subr.bf16.mxu0 %v1297
    %1853 = vmatpush1.bf16.msra.mxu0 %v1296
    %1854 = vmatprep.subr.bf16.mxu0 %v1303
    %1855 = vmatpush1.bf16.msra.mxu0 %v1302
    %1856 = vmatprep.subr.bf16.mxu0 %v1309
    %1857 = vmatpush1.bf16.msra.mxu0 %v1308
    %1858 = vmatprep.subr.bf16.mxu0 %v1315
    %1859 = vmatpush1.bf16.msra.mxu0 %v1314
    %1860 = vmatprep.subr.bf16.mxu0 %v1321
    %1861 = vmatpush1.bf16.msra.mxu0 %v1320
    %1862 = vmatprep.subr.bf16.mxu0 %v1327
    %1863 = vmatpush1.bf16.msra.mxu0 %v1326
    %1864 = vmatprep.subr.bf16.mxu0 %v1333
    %1865 = vmatpush1.bf16.msra.mxu0 %v1332
    %1866 = vmatprep.subr.bf16.mxu0 %v1339
    %1867 = vmatpush1.bf16.msra.mxu0 %v1338
    %1868 = vmatprep.subr.bf16.mxu0 %v1345
    %1869 = vmatpush1.bf16.msra.mxu0 %v1344
    %1870 = vmatprep.subr.bf16.mxu0 %v1351
    %1871 = vmatpush1.bf16.msra.mxu0 %v1350
    %1872 = vmatprep.subr.bf16.mxu0 %v1357
    %1873 = vmatpush1.bf16.msra.mxu0 %v1356
    %1874 = vmatprep.mubr.bf16.mxu0 %v77
    %1875 = vmatmul.mubr.bf16.gmra.mrb[0].mxu0 %v76
    %v1876 = vpop.f32.mrb[0].mxu0
    %v1877 = vadd.f32 %v375, %v1876
    %v1878 = vpop.f32.mrb[0].mxu0
    %v1879 = vadd.f32 %v379, %v1878
    %v1880 = vpop.f32.mrb[0].mxu0
    %v1881 = vpop.f32.mrb[0].mxu0
    %1882 = vdwg.mxu0
    %1883 = vmatprep.subr.bf16.mxu0 %v1363
    %1884 = vmatpush1.bf16.msra.mxu0 %v1362
    %1885 = vmatprep.subr.bf16.mxu0 %v1369
    %1886 = vmatpush1.bf16.msra.mxu0 %v1368
    %1887 = vmatprep.subr.bf16.mxu0 %v1375
    %1888 = vmatpush1.bf16.msra.mxu0 %v1374
    %1889 = vmatprep.subr.bf16.mxu0 %v1381
    %1890 = vmatpush1.bf16.msra.mxu0 %v1380
    %1891 = vmatprep.subr.bf16.mxu0 %v1387
    %1892 = vmatpush1.bf16.msra.mxu0 %v1386
    %1893 = vmatprep.subr.bf16.mxu0 %v1393
    %1894 = vmatpush1.bf16.msra.mxu0 %v1392
    %1895 = vmatprep.subr.bf16.mxu0 %v1399
    %1896 = vmatpush1.bf16.msra.mxu0 %v1398
    %1897 = vmatprep.subr.bf16.mxu0 %v1405
    %1898 = vmatpush1.bf16.msra.mxu0 %v1404
    %1899 = vmatprep.subr.bf16.mxu0 %v1411
    %1900 = vmatpush1.bf16.msra.mxu0 %v1410
    %1901 = vmatprep.subr.bf16.mxu0 %v1417
    %1902 = vmatpush1.bf16.msra.mxu0 %v1416
    %1903 = vmatprep.subr.bf16.mxu0 %v1423
    %1904 = vmatpush1.bf16.msra.mxu0 %v1422
    %1905 = vmatprep.subr.bf16.mxu0 %v1429
    %1906 = vmatpush1.bf16.msra.mxu0 %v1428
    %1907 = vmatprep.subr.bf16.mxu0 %v1435
    %1908 = vmatpush1.bf16.msra.mxu0 %v1434
    %1909 = vmatprep.subr.bf16.mxu0 %v1441
    %1910 = vmatpush1.bf16.msra.mxu0 %v1440
    %1911 = vmatprep.subr.bf16.mxu0 %v1447
    %1912 = vmatpush1.bf16.msra.mxu0 %v1446
    %1913 = vmatprep.subr.bf16.mxu0 %v1453
    %1914 = vmatpush1.bf16.msra.mxu0 %v1452
    %1915 = vmatprep.mubr.bf16.mxu0 %v79
    %1916 = vmatmul.mubr.bf16.gmra.mrb[0].mxu0 %v78
    %v1917 = vpop.f32.mrb[0].mxu0
    %v1918 = vadd.f32 %v1877, %v1917
    %v1919 = vpop.f32.mrb[0].mxu0
    %v1920 = vadd.f32 %v1879, %v1919
    %v1921 = vpop.f32.mrb[0].mxu0
    %v1922 = vpop.f32.mrb[0].mxu0
    %1923 = vdwg.mxu0
    %1924 = vmatprep.subr.bf16.mxu0 %v1459
    %1925 = vmatpush1.bf16.msra.mxu0 %v1458
    %1926 = vmatprep.subr.bf16.mxu0 %v1465
    %1927 = vmatpush1.bf16.msra.mxu0 %v1464
    %1928 = vmatprep.subr.bf16.mxu0 %v1471
    %1929 = vmatpush1.bf16.msra.mxu0 %v1470
    %1930 = vmatprep.subr.bf16.mxu0 %v1477
    %1931 = vmatpush1.bf16.msra.mxu0 %v1476
    %1932 = vmatprep.subr.bf16.mxu0 %v1483
    %1933 = vmatpush1.bf16.msra.mxu0 %v1482
    %1934 = vmatprep.subr.bf16.mxu0 %v1489
    %1935 = vmatpush1.bf16.msra.mxu0 %v1488
    %1936 = vmatprep.subr.bf16.mxu0 %v1495
    %1937 = vmatpush1.bf16.msra.mxu0 %v1494
    %1938 = vmatprep.subr.bf16.mxu0 %v1501
    %1939 = vmatpush1.bf16.msra.mxu0 %v1500
    %1940 = vmatprep.subr.bf16.mxu0 %v1507
    %1941 = vmatpush1.bf16.msra.mxu0 %v1506
    %1942 = vmatprep.subr.bf16.mxu0 %v1513
    %1943 = vmatpush1.bf16.msra.mxu0 %v1512
    %1944 = vmatprep.subr.bf16.mxu0 %v1519
    %1945 = vmatpush1.bf16.msra.mxu0 %v1518
    %1946 = vmatprep.subr.bf16.mxu0 %v1525
    %1947 = vmatpush1.bf16.msra.mxu0 %v1524
    %1948 = vmatprep.subr.bf16.mxu0 %v1531
    %1949 = vmatpush1.bf16.msra.mxu0 %v1530
    %1950 = vmatprep.subr.bf16.mxu0 %v1537
    %1951 = vmatpush1.bf16.msra.mxu0 %v1536
    %1952 = vmatprep.subr.bf16.mxu0 %v1543
    %1953 = vmatpush1.bf16.msra.mxu0 %v1542
    %1954 = vmatprep.subr.bf16.mxu0 %v1549
    %1955 = vmatpush1.bf16.msra.mxu0 %v1548
    %1956 = vmatprep.mubr.bf16.mxu0 %v81
    %1957 = vmatmul.mubr.bf16.gmra.mrb[0].mxu0 %v80
    %v1958 = vpop.f32.mrb[0].mxu0
    %v1959 = vadd.f32 %v1918, %v1958
    %v1960 = vpop.f32.mrb[0].mxu0
    %v1961 = vadd.f32 %v1920, %v1960
    %v1962 = vpop.f32.mrb[0].mxu0
    %v1963 = vpop.f32.mrb[0].mxu0
    %1964 = vdwg.mxu0
    %1965 = vmatprep.subr.bf16.mxu0 %v1269
    %1966 = vmatpush1.bf16.msra.mxu0 %v1268
    %1967 = vmatprep.subr.bf16.mxu0 %v1275
    %1968 = vmatpush1.bf16.msra.mxu0 %v1274
    %1969 = vmatprep.subr.bf16.mxu0 %v1281
    %1970 = vmatpush1.bf16.msra.mxu0 %v1280
    %1971 = vmatprep.subr.bf16.mxu0 %v1287
    %1972 = vmatpush1.bf16.msra.mxu0 %v1286
    %1973 = vmatprep.subr.bf16.mxu0 %v1293
    %1974 = vmatpush1.bf16.msra.mxu0 %v1292
    %1975 = vmatprep.subr.bf16.mxu0 %v1299
    %1976 = vmatpush1.bf16.msra.mxu0 %v1298
    %1977 = vmatprep.subr.bf16.mxu0 %v1305
    %1978 = vmatpush1.bf16.msra.mxu0 %v1304
    %1979 = vmatprep.subr.bf16.mxu0 %v1311
    %1980 = vmatpush1.bf16.msra.mxu0 %v1310
    %1981 = vmatprep.subr.bf16.mxu0 %v1317
    %1982 = vmatpush1.bf16.msra.mxu0 %v1316
    %1983 = vmatprep.subr.bf16.mxu0 %v1323
    %1984 = vmatpush1.bf16.msra.mxu0 %v1322
    %1985 = vmatprep.subr.bf16.mxu0 %v1329
    %1986 = vmatpush1.bf16.msra.mxu0 %v1328
    %1987 = vmatprep.subr.bf16.mxu0 %v1335
    %1988 = vmatpush1.bf16.msra.mxu0 %v1334
    %1989 = vmatprep.subr.bf16.mxu0 %v1341
    %1990 = vmatpush1.bf16.msra.mxu0 %v1340
    %1991 = vmatprep.subr.bf16.mxu0 %v1347
    %1992 = vmatpush1.bf16.msra.mxu0 %v1346
    %1993 = vmatprep.subr.bf16.mxu0 %v1353
    %1994 = vmatpush1.bf16.msra.mxu0 %v1352
    %1995 = vmatprep.subr.bf16.mxu0 %v1359
    %1996 = vmatpush1.bf16.msra.mxu0 %v1358
    %1997 = vmatprep.mubr.bf16.mxu0 %v77
    %1998 = vmatmul.mubr.bf16.gmra.mrb[0].mxu0 %v76
    %v1999 = vpop.f32.mrb[0].mxu0
    %v2000 = vadd.f32 %v383, %v1999
    %v2001 = vpop.f32.mrb[0].mxu0
    %v2002 = vadd.f32 %v387, %v2001
    %v2003 = vpop.f32.mrb[0].mxu0
    %v2004 = vpop.f32.mrb[0].mxu0
    %2005 = vdwg.mxu0
    %2006 = vmatprep.subr.bf16.mxu0 %v1365
    %2007 = vmatpush1.bf16.msra.mxu0 %v1364
    %2008 = vmatprep.subr.bf16.mxu0 %v1371
    %2009 = vmatpush1.bf16.msra.mxu0 %v1370
    %2010 = vmatprep.subr.bf16.mxu0 %v1377
    %2011 = vmatpush1.bf16.msra.mxu0 %v1376
    %2012 = vmatprep.subr.bf16.mxu0 %v1383
    %2013 = vmatpush1.bf16.msra.mxu0 %v1382
    %2014 = vmatprep.subr.bf16.mxu0 %v1389
    %2015 = vmatpush1.bf16.msra.mxu0 %v1388
    %2016 = vmatprep.subr.bf16.mxu0 %v1395
    %2017 = vmatpush1.bf16.msra.mxu0 %v1394
    %2018 = vmatprep.subr.bf16.mxu0 %v1401
    %2019 = vmatpush1.bf16.msra.mxu0 %v1400
    %2020 = vmatprep.subr.bf16.mxu0 %v1407
    %2021 = vmatpush1.bf16.msra.mxu0 %v1406
    %2022 = vmatprep.subr.bf16.mxu0 %v1413
    %2023 = vmatpush1.bf16.msra.mxu0 %v1412
    %2024 = vmatprep.subr.bf16.mxu0 %v1419
    %2025 = vmatpush1.bf16.msra.mxu0 %v1418
    %2026 = vmatprep.subr.bf16.mxu0 %v1425
    %2027 = vmatpush1.bf16.msra.mxu0 %v1424
    %2028 = vmatprep.subr.bf16.mxu0 %v1431
    %2029 = vmatpush1.bf16.msra.mxu0 %v1430
    %2030 = vmatprep.subr.bf16.mxu0 %v1437
    %2031 = vmatpush1.bf16.msra.mxu0 %v1436
    %2032 = vmatprep.subr.bf16.mxu0 %v1443
    %2033 = vmatpush1.bf16.msra.mxu0 %v1442
    %2034 = vmatprep.subr.bf16.mxu0 %v1449
    %2035 = vmatpush1.bf16.msra.mxu0 %v1448
    %2036 = vmatprep.subr.bf16.mxu0 %v1455
    %2037 = vmatpush1.bf16.msra.mxu0 %v1454
    %2038 = vmatprep.mubr.bf16.mxu0 %v79
    %2039 = vmatmul.mubr.bf16.gmra.mrb[0].mxu0 %v78
    %v2040 = vpop.f32.mrb[0].mxu0
    %v2041 = vadd.f32 %v2000, %v2040
    %v2042 = vpop.f32.mrb[0].mxu0
    %v2043 = vadd.f32 %v2002, %v2042
    %v2044 = vpop.f32.mrb[0].mxu0
    %v2045 = vpop.f32.mrb[0].mxu0
    %2046 = vdwg.mxu0
    %2047 = vmatprep.subr.bf16.mxu0 %v1461
    %2048 = vmatpush1.bf16.msra.mxu0 %v1460
    %2049 = vmatprep.subr.bf16.mxu0 %v1467
    %2050 = vmatpush1.bf16.msra.mxu0 %v1466
    %2051 = vmatprep.subr.bf16.mxu0 %v1473
    %2052 = vmatpush1.bf16.msra.mxu0 %v1472
    %2053 = vmatprep.subr.bf16.mxu0 %v1479
    %2054 = vmatpush1.bf16.msra.mxu0 %v1478
    %2055 = vmatprep.subr.bf16.mxu0 %v1485
    %2056 = vmatpush1.bf16.msra.mxu0 %v1484
    %2057 = vmatprep.subr.bf16.mxu0 %v1491
    %2058 = vmatpush1.bf16.msra.mxu0 %v1490
    %2059 = vmatprep.subr.bf16.mxu0 %v1497
    %2060 = vmatpush1.bf16.msra.mxu0 %v1496
    %2061 = vmatprep.subr.bf16.mxu0 %v1503
    %2062 = vmatpush1.bf16.msra.mxu0 %v1502
    %2063 = vmatprep.subr.bf16.mxu0 %v1509
    %2064 = vmatpush1.bf16.msra.mxu0 %v1508
    %2065 = vmatprep.subr.bf16.mxu0 %v1515
    %2066 = vmatpush1.bf16.msra.mxu0 %v1514
    %2067 = vmatprep.subr.bf16.mxu0 %v1521
    %2068 = vmatpush1.bf16.msra.mxu0 %v1520
    %2069 = vmatprep.subr.bf16.mxu0 %v1527
    %2070 = vmatpush1.bf16.msra.mxu0 %v1526
    %2071 = vmatprep.subr.bf16.mxu0 %v1533
    %2072 = vmatpush1.bf16.msra.mxu0 %v1532
    %2073 = vmatprep.subr.bf16.mxu0 %v1539
    %2074 = vmatpush1.bf16.msra.mxu0 %v1538
    %2075 = vmatprep.subr.bf16.mxu0 %v1545
    %2076 = vmatpush1.bf16.msra.mxu0 %v1544
    %2077 = vmatprep.subr.bf16.mxu0 %v1551
    %2078 = vmatpush1.bf16.msra.mxu0 %v1550
    %2079 = vmatprep.mubr.bf16.mxu0 %v81
    %2080 = vmatmul.mubr.bf16.gmra.mrb[0].mxu0 %v80
    %v2081 = vpop.f32.mrb[0].mxu0
    %v2082 = vadd.f32 %v2041, %v2081
    %v2083 = vpop.f32.mrb[0].mxu0
    %v2084 = vadd.f32 %v2043, %v2083
    %v2085 = vpop.f32.mrb[0].mxu0
    %v2086 = vpop.f32.mrb[0].mxu0
    %2087 = vdwg.mxu0
    %2088 = vmatprep.subr.bf16.mxu0 %v1271
    %2089 = vmatpush1.bf16.msra.mxu0 %v1270
    %2090 = vmatprep.subr.bf16.mxu0 %v1277
    %2091 = vmatpush1.bf16.msra.mxu0 %v1276
    %2092 = vmatprep.subr.bf16.mxu0 %v1283
    %2093 = vmatpush1.bf16.msra.mxu0 %v1282
    %2094 = vmatprep.subr.bf16.mxu0 %v1289
    %2095 = vmatpush1.bf16.msra.mxu0 %v1288
    %2096 = vmatprep.subr.bf16.mxu0 %v1295
    %2097 = vmatpush1.bf16.msra.mxu0 %v1294
    %2098 = vmatprep.subr.bf16.mxu0 %v1301
    %2099 = vmatpush1.bf16.msra.mxu0 %v1300
    %2100 = vmatprep.subr.bf16.mxu0 %v1307
    %2101 = vmatpush1.bf16.msra.mxu0 %v1306
    %2102 = vmatprep.subr.bf16.mxu0 %v1313
    %2103 = vmatpush1.bf16.msra.mxu0 %v1312
    %2104 = vmatprep.subr.bf16.mxu0 %v1319
    %2105 = vmatpush1.bf16.msra.mxu0 %v1318
    %2106 = vmatprep.subr.bf16.mxu0 %v1325
    %2107 = vmatpush1.bf16.msra.mxu0 %v1324
    %2108 = vmatprep.subr.bf16.mxu0 %v1331
    %2109 = vmatpush1.bf16.msra.mxu0 %v1330
    %2110 = vmatprep.subr.bf16.mxu0 %v1337
    %2111 = vmatpush1.bf16.msra.mxu0 %v1336
    %2112 = vmatprep.subr.bf16.mxu0 %v1343
    %2113 = vmatpush1.bf16.msra.mxu0 %v1342
    %2114 = vmatprep.subr.bf16.mxu0 %v1349
    %2115 = vmatpush1.bf16.msra.mxu0 %v1348
    %2116 = vmatprep.subr.bf16.mxu0 %v1355
    %2117 = vmatpush1.bf16.msra.mxu0 %v1354
    %2118 = vmatprep.subr.bf16.mxu0 %v1361
    %2119 = vmatpush1.bf16.msra.mxu0 %v1360
    %2120 = vmatprep.mubr.bf16.mxu0 %v77
    %2121 = vmatmul.mubr.bf16.gmra.mrb[0].mxu0 %v76
    %v2122 = vpop.f32.mrb[0].mxu0
    %v2123 = vadd.f32 %v391, %v2122
    %v2124 = vpop.f32.mrb[0].mxu0
    %v2125 = vadd.f32 %v395, %v2124
    %v2126 = vpop.f32.mrb[0].mxu0
    %v2127 = vpop.f32.mrb[0].mxu0
    %2128 = vdwg.mxu0
    %2129 = vmatprep.subr.bf16.mxu0 %v1367
    %2130 = vmatpush1.bf16.msra.mxu0 %v1366
    %2131 = vmatprep.subr.bf16.mxu0 %v1373
    %2132 = vmatpush1.bf16.msra.mxu0 %v1372
    %2133 = vmatprep.subr.bf16.mxu0 %v1379
    %2134 = vmatpush1.bf16.msra.mxu0 %v1378
    %2135 = vmatprep.subr.bf16.mxu0 %v1385
    %2136 = vmatpush1.bf16.msra.mxu0 %v1384
    %2137 = vmatprep.subr.bf16.mxu0 %v1391
    %2138 = vmatpush1.bf16.msra.mxu0 %v1390
    %2139 = vmatprep.subr.bf16.mxu0 %v1397
    %2140 = vmatpush1.bf16.msra.mxu0 %v1396
    %2141 = vmatprep.subr.bf16.mxu0 %v1403
    %2142 = vmatpush1.bf16.msra.mxu0 %v1402
    %2143 = vmatprep.subr.bf16.mxu0 %v1409
    %2144 = vmatpush1.bf16.msra.mxu0 %v1408
    %2145 = vmatprep.subr.bf16.mxu0 %v1415
    %2146 = vmatpush1.bf16.msra.mxu0 %v1414
    %2147 = vmatprep.subr.bf16.mxu0 %v1421
    %2148 = vmatpush1.bf16.msra.mxu0 %v1420
    %2149 = vmatprep.subr.bf16.mxu0 %v1427
    %2150 = vmatpush1.bf16.msra.mxu0 %v1426
    %2151 = vmatprep.subr.bf16.mxu0 %v1433
    %2152 = vmatpush1.bf16.msra.mxu0 %v1432
    %2153 = vmatprep.subr.bf16.mxu0 %v1439
    %2154 = vmatpush1.bf16.msra.mxu0 %v1438
    %2155 = vmatprep.subr.bf16.mxu0 %v1445
    %2156 = vmatpush1.bf16.msra.mxu0 %v1444
    %2157 = vmatprep.subr.bf16.mxu0 %v1451
    %2158 = vmatpush1.bf16.msra.mxu0 %v1450
    %2159 = vmatprep.subr.bf16.mxu0 %v1457
    %2160 = vmatpush1.bf16.msra.mxu0 %v1456
    %2161 = vmatprep.mubr.bf16.mxu0 %v79
    %2162 = vmatmul.mubr.bf16.gmra.mrb[0].mxu0 %v78
    %v2163 = vpop.f32.mrb[0].mxu0
    %v2164 = vadd.f32 %v2123, %v2163
    %v2165 = vpop.f32.mrb[0].mxu0
    %v2166 = vadd.f32 %v2125, %v2165
    %v2167 = vpop.f32.mrb[0].mxu0
    %v2168 = vpop.f32.mrb[0].mxu0
    %2169 = vdwg.mxu0
    %2170 = vmatprep.subr.bf16.mxu0 %v1463
    %2171 = vmatpush1.bf16.msra.mxu0 %v1462
    %2172 = vmatprep.subr.bf16.mxu0 %v1469
    %2173 = vmatpush1.bf16.msra.mxu0 %v1468
    %2174 = vmatprep.subr.bf16.mxu0 %v1475
    %2175 = vmatpush1.bf16.msra.mxu0 %v1474
    %2176 = vmatprep.subr.bf16.mxu0 %v1481
    %2177 = vmatpush1.bf16.msra.mxu0 %v1480
    %2178 = vmatprep.subr.bf16.mxu0 %v1487
    %2179 = vmatpush1.bf16.msra.mxu0 %v1486
    %2180 = vmatprep.subr.bf16.mxu0 %v1493
    %2181 = vmatpush1.bf16.msra.mxu0 %v1492
    %2182 = vmatprep.subr.bf16.mxu0 %v1499
    %2183 = vmatpush1.bf16.msra.mxu0 %v1498
    %2184 = vmatprep.subr.bf16.mxu0 %v1505
    %2185 = vmatpush1.bf16.msra.mxu0 %v1504
    %2186 = vmatprep.subr.bf16.mxu0 %v1511
    %2187 = vmatpush1.bf16.msra.mxu0 %v1510
    %2188 = vmatprep.subr.bf16.mxu0 %v1517
    %2189 = vmatpush1.bf16.msra.mxu0 %v1516
    %2190 = vmatprep.subr.bf16.mxu0 %v1523
    %2191 = vmatpush1.bf16.msra.mxu0 %v1522
    %2192 = vmatprep.subr.bf16.mxu0 %v1529
    %2193 = vmatpush1.bf16.msra.mxu0 %v1528
    %2194 = vmatprep.subr.bf16.mxu0 %v1535
    %2195 = vmatpush1.bf16.msra.mxu0 %v1534
    %2196 = vmatprep.subr.bf16.mxu0 %v1541
    %2197 = vmatpush1.bf16.msra.mxu0 %v1540
    %2198 = vmatprep.subr.bf16.mxu0 %v1547
    %2199 = vmatpush1.bf16.msra.mxu0 %v1546
    %2200 = vmatprep.subr.bf16.mxu0 %v1553
    %2201 = vmatpush1.bf16.msra.mxu0 %v1552
    %2202 = vmatprep.mubr.bf16.mxu0 %v81
    %2203 = vmatmul.mubr.bf16.gmra.mrb[0].mxu0 %v80
    %v2204 = vpop.f32.mrb[0].mxu0
    %v2205 = vadd.f32 %v2164, %v2204
    %v2206 = vpop.f32.mrb[0].mxu0
    %v2207 = vadd.f32 %v2166, %v2206
    %v2208 = vpop.f32.mrb[0].mxu0
    %v2209 = vpop.f32.mrb[0].mxu0
    %2210 = vdwg.mxu0
    %v2211 = vtanh.pop %v1959
    %v2212 = vtanh.pop %v1961
    %v2213 = vtanh.pop %v2082
    %v2214 = vtanh.pop %v2084
    %v2215 = vtanh.pop %v2205
    %v2216 = vtanh.pop %v2207
    %v2223 = vcombine.low %v2211, %v2212
    %v2224 = vcombine.low %v2213, %v2214
    %v2226 = vunpack.c.l.s4 1983009808
    %v2227 = vunpack.c.0.s8 %v2226
    %v2228 = vlaneseq
    %v2229 = vshrl.u32 %v2228, 7
    %v2230 = vsub.s32 %v2227, %v2229
    %v2231 = vrot.slane %v2223, %v2230
    %v2233 = vunpack.c.l.s4 1983009808
    %v2234 = vunpack.c.0.s8 %v2233
    %v2235 = vlaneseq
    %v2236 = vshrl.u32 %v2235, 7
    %v2237 = vsub.s32 %v2234, %v2236
    %v2238 = vrot.slane %v2224, %v2237
    %v2239 = vcombine.low %v2231, %v2238
    %v2240 = vcombine.low %v2215, %v2216
    %v2242 = vunpack.c.l.s4 1983009808
    %v2243 = vunpack.c.0.s8 %v2242
    %v2244 = vlaneseq
    %v2245 = vshrl.u32 %v2244, 7
    %v2246 = vsub.s32 %v2243, %v2245
    %v2247 = vrot.slane %v2240, %v2246
    %2250 = vst [vmem:[#allocation7] sm:$0xff] %v2239
    %2251 = vst [vmem:[#allocation7 + $0x8] sm:$0xf] %v2247
    // Predicated region
    $region22: #{bert_pooler.1} parent=1 // pred_check
      _
    $region23: #{bert_pooler.1} parent=1 // pred_check_branch
      %2253 = sbr.rel (0) target = $region25
    $region24: #{bert_pooler.1} parent=1 // pred_region
      %s2255 = ssub.s32 192, 192
      %2256 = vsyncadd [#allocation4], %s2255
      %s2258 = sshll.u32 [#allocation7], 4
      %s2259 = int_to_ptr.vmem [resolvable:$true] %s2258
      %2261 = dma.vmem_to_hbm [thread:$0]  %s2259, 192, %s3, [#allocation4]
    $region25: #{bert_pooler.1} parent=1 // pred_fallthru
      _
    // Predicated region
    $region26: #{bert_pooler.1} parent=1 // pred_check
      _
    $region27: #{bert_pooler.1} parent=1 // pred_check_branch
      %2263 = sbr.rel (0) target = $region29
    $region28: #{bert_pooler.1} parent=1 // pred_region
      %2264 = dma.done [#allocation4], 192
    $region29: #{bert_pooler.1} parent=1 // pred_fallthru
      _
    %2265 = vsyncpa [#allocation3], 1
    %2266 = vsyncpa [#allocation6], 1
    %2267 = vsyncpa [#allocation4], 1

</llo_original>
